<compile_context>
chip_gen: v6e
topology: v6e:2x2x1
jax: 0.10.0
libtpu: 0.0.40
codegen_flags: <defaults>
</compile_context>

<pallas_src>
import numpy as np
import jax
import jax.numpy as jnp
from jax.experimental import pallas as pl
from jax.experimental.pallas import tpu as pltpu

EPS = 1e-5


# ------------------------------- Pallas kernel ------------------------------ #

def _bottleneck_fused_kernel(x_ref, w1_ref, w2_ref, w3_ref,
                             b1_ref, b2_ref, b3_ref, o_ref, pad_ref):
    _, H, W, Cin = x_ref.shape
    TH = o_ref.shape[1]
    P = w1_ref.shape[1]
    Wp = pad_ref.shape[1]
    M = TH * W
    bf16 = jnp.bfloat16

    r = pl.program_id(1)
    n_rows = pl.num_programs(1)
    rstart = pl.multiple_of(r * TH, TH)

    # ---- conv1 (1x1, BN1 scale pre-folded into w1) + shift + relu --------------
    # Block's own TH rows (xm is reused below as the identity residual).
    xm = x_ref[0, pl.ds(rstart, TH)].reshape(M, Cin)                      # (M, Cin)
    c1 = jnp.maximum(
        jnp.dot(xm.astype(bf16), w1_ref[...],
                preferred_element_type=jnp.float32) + b1_ref[...], 0.0)   # (M, P)

    # 1-row halos needed by conv2, recomputed from x. They are zeroed at the true
    # image borders because conv2's zero-padding applies AFTER bn1+relu.
    x_top = x_ref[0, pl.ds(jnp.maximum(rstart - 1, 0), 1)]                # (1, W, Cin)
    x_bot = x_ref[0, pl.ds(jnp.minimum(rstart + TH, H - 1), 1)]           # (1, W, Cin)
    xh = jnp.concatenate([x_top, x_bot], axis=0).reshape(2 * W, Cin)
    ch = jnp.maximum(
        jnp.dot(xh.astype(bf16), w1_ref[...],
                preferred_element_type=jnp.float32) + b1_ref[...], 0.0)
    ch = ch.reshape(2, W, P)
    c1_top = jnp.where(r > 0, ch[0], 0.0)                                 # (W, P)
    c1_bot = jnp.where(r < n_rows - 1, ch[1], 0.0)                        # (W, P)

    # ---- padded conv2 input: bf16 scratch, every element stored once per step --
    rows = jnp.concatenate(
        [c1_top[None], c1.reshape(TH, W, P), c1_bot[None]], axis=0).astype(bf16)
    zl = jnp.zeros((TH + 2, 1, P), bf16)
    zr = jnp.zeros((TH + 2, Wp - W - 1, P), bf16)
    pad_ref[...] = jnp.concatenate([zl, rows, zr], axis=1)                # (TH+2, Wp, P)

    # ---- conv2 (3x3, BN2 scale folded) as ONE matmul over K = 9P ----------------
    taps = [pad_ref[dy:dy + TH, dx:dx + W, :].reshape(M, P)
            for dy in range(3) for dx in range(3)]
    patches = jnp.concatenate(taps, axis=-1)                              # (M, 9P) bf16
    o2 = jnp.maximum(
        jnp.dot(patches, w2_ref[...],
                preferred_element_type=jnp.float32) + b2_ref[...], 0.0)   # (M, P)

    # ---- conv3 (1x1, BN3 scale folded) + shift + identity residual + relu -------
    a3 = jnp.dot(o2.astype(bf16), w3_ref[...],
                 preferred_element_type=jnp.float32)                      # (M, 4P)
    y = jnp.maximum(a3 + b3_ref[...] + xm, 0.0)
    o_ref[0] = y.reshape(TH, W, 4 * P).astype(o_ref.dtype)


# ------------------------------ pallas_call setup ---------------------------- #

def _round_up(v, m):
    return (v + m - 1) // m * m


def _vmem_limit_bytes():
    # v7x has 64 MiB VMEM per TensorCore -> leave headroom for the compiler's
    # double-buffers; v5e / v6e have 128 MiB, so a larger scoped budget is fine.
    try:
        cap = pltpu.get_tpu_info().vmem_capacity_bytes
    except Exception:  # narrow fallback: hardware query unavailable
        return 28 * 1024 * 1024
    return 28 * 1024 * 1024 if cap <= 64 * 1024 * 1024 else 64 * 1024 * 1024


def _pick_tile_h(H, W, Cin, P):
    """Largest row tile TH dividing H such that per-step intermediates stay small
    and (when H allows) there are >= 2 row blocks, keeping both v7x TensorCores
    busy even at batch 1."""
    divisors = [t for t in range(H, 0, -1) if H % t == 0]

    def est(th):
        m = th * W
        return (m * Cin * 4                                   # x rows live as f32 value
                + (th + 2) * _round_up(W + 2, 16) * P * 2     # padded bf16 scratch
                + 2 * m * 9 * P * 2                           # im2col taps + packed value
                + m * P * 4 * 2 + m * 4 * P * 4)              # f32 conv results

    budget = 12 * 1024 * 1024
    for th in divisors:
        if est(th) <= budget and (H < 16 or H // th >= 2):
            return th
    for th in divisors:
        if est(th) <= budget:
            return th
    return divisors[-1]


def _make_fused_call(N, H, W, Cin, P, TH, x_dtype, out_dtype):
    Wp = _round_up(W + 2, 16)

    def const(shape):
        return pl.BlockSpec(shape, lambda n, r: (0,) * len(shape))

    flops = 2 * N * H * W * P * (Cin + 9 * P + 4 * P)
    bytes_accessed = int(
        N * H * W * Cin * np.dtype(x_dtype).itemsize
        + N * H * W * 4 * P * np.dtype(out_dtype).itemsize
        + (Cin * P + 9 * P * P + 4 * P * P) * 2
        + 6 * P * 4)

    return pl.pallas_call(
        _bottleneck_fused_kernel,
        out_shape=jax.ShapeDtypeStruct((N, H, W, 4 * P), out_dtype),
        grid=(N, H // TH),
        in_specs=[
            # x: full image per batch element (constant over the row axis -> one
            # DMA per image); gives the kernel direct access to the 1-row halo.
            pl.BlockSpec((1, H, W, Cin), lambda n, r: (n, 0, 0, 0)),
            const((Cin, P)),             # w1 * bn1_scale  (bf16)
            const((9 * P, P)),           # w2 * bn2_scale  (bf16, rows ordered (dy,dx,cin))
            const((P, 4 * P)),           # w3 * bn3_scale  (bf16)
            const((1, P)), const((1, P)), const((1, 4 * P)),   # bn shifts (f32)
        ],
        out_specs=pl.BlockSpec((1, TH, W, 4 * P), lambda n, r: (n, r, 0, 0)),
        scratch_shapes=[pltpu.VMEM((TH + 2, Wp, P), jnp.bfloat16)],
        compiler_params=pltpu.CompilerParams(
            dimension_semantics=("parallel", "parallel"),
            vmem_limit_bytes=_vmem_limit_bytes()),
        cost_estimate=pl.CostEstimate(flops=flops, transcendentals=0,
                                      bytes_accessed=bytes_accessed),
    )


# ----------------------------- Bottleneck forward ---------------------------- #

def fold_bn(gamma, beta, mean, var):
    scale = gamma / jnp.sqrt(var + EPS)
    shift = beta - mean * scale
    return scale.astype(jnp.float32), shift.astype(jnp.float32)


def bottleneck_forward_nhwc(x_nhwc, params, out_dtype=None):
    """Fused Bottleneck forward on an NHWC activation (no layout transposes).
    Deployment note: keep W a multiple of 8 and channel counts multiples of 128
    to avoid hidden relayouts / masked partial stores."""
    N, H, W, Cin = x_nhwc.shape
    P = params["w1"].shape[1]
    assert Cin == 4 * P, "identity residual requires inplanes == planes * expansion"
    if out_dtype is None:
        out_dtype = x_nhwc.dtype   # pass jnp.bfloat16 to halve the output HBM write

    s1, b1 = fold_bn(*params["bn1"])
    s2, b2 = fold_bn(*params["bn2"])
    s3, b3 = fold_bn(*params["bn3"])

    # BN scales folded into the conv weights (bf16 for the MXU); shifts stay f32.
    w1f = (params["w1"] * s1[None, :]).astype(jnp.bfloat16)                       # (Cin, P)
    w2f = (params["w2"] * s2[None, None, None, :]).reshape(9 * P, P).astype(jnp.bfloat16)
    w3f = (params["w3"] * s3[None, :]).astype(jnp.bfloat16)                       # (P, 4P)

    TH = _pick_tile_h(H, W, Cin, P)
    call = _make_fused_call(N, H, W, Cin, P, TH, x_nhwc.dtype, out_dtype)
    return call(x_nhwc, w1f, w2f, w3f, b1[None, :], b2[None, :], b3[None, :])


def bottleneck_forward(x_nchw, params, out_dtype=None):
    """PyTorch-parity entry point (NCHW in / NCHW out).

    TODO(synk): keep the surrounding network NHWC and call bottleneck_forward_nhwc
    directly; each transpose below re-reads and re-writes the full activation in
    HBM and the block is HBM-bound.
    """
    out = bottleneck_forward_nhwc(jnp.transpose(x_nchw, (0, 2, 3, 1)), params, out_dtype)
    return jnp.transpose(out, (0, 3, 1, 2))


# ------------------------------- Params / ref -------------------------------- #

def init_params(key, inplanes, planes):
    ks = jax.random.split(key, 6)

    def bn_params(k, c):
        k1, k2, k3, k4 = jax.random.split(k, 4)
        gamma = jax.random.uniform(k1, (c,), jnp.float32, 0.5, 1.5)
        beta = jax.random.normal(k2, (c,), jnp.float32) * 0.1
        mean = jax.random.normal(k3, (c,), jnp.float32) * 0.1
        var = jax.random.uniform(k4, (c,), jnp.float32, 0.5, 1.5)
        return gamma, beta, mean, var

    # conv weights stored channels-last: (Cin, Cout) and (3, 3, Cin, Cout)
    w1 = jax.random.normal(ks[0], (inplanes, planes), jnp.float32) * 0.1
    w2 = jax.random.normal(ks[1], (3, 3, planes, planes), jnp.float32) * 0.1
    w3 = jax.random.normal(ks[2], (planes, 4 * planes), jnp.float32) * 0.1
    return {"w1": w1, "w2": w2, "w3": w3,
            "bn1": bn_params(ks[3], planes),
            "bn2": bn_params(ks[4], planes),
            "bn3": bn_params(ks[5], 4 * planes)}


def reference_forward(x_nchw, params):
    """Plain-JAX reference mirroring the PyTorch forward (eval-mode BN, f32)."""
    hp = jax.lax.Precision.HIGHEST
    x = jnp.transpose(x_nchw, (0, 2, 3, 1)).astype(jnp.float32)

    def bn(y, p):
        gamma, beta, mean, var = p
        return (y - mean) / jnp.sqrt(var + EPS) * gamma + beta

    out = jnp.einsum('nhwc,co->nhwo', x, params["w1"], precision=hp)
    out = jax.nn.relu(bn(out, params["bn1"]))
    N, H, W, _ = out.shape
    outp = jnp.pad(out, ((0, 0), (1, 1), (1, 1), (0, 0)))
    acc = 0.0
    for dy in range(3):
        for dx in range(3):
            acc = acc + jnp.einsum('nhwc,co->nhwo',
                                   outp[:, dy:dy + H, dx:dx + W, :],
                                   params["w2"][dy, dx], precision=hp)
    out = jax.nn.relu(bn(acc, params["bn2"]))
    out = jnp.einsum('nhwc,co->nhwo', out, params["w3"], precision=hp)
    out = jax.nn.relu(bn(out, params["bn3"]) + x)
    return jnp.transpose(out, (0, 3, 1, 2))


if __name__ == "__main__":
    # Small shapes; inplanes == planes * expansion so the identity residual applies.
    N, inplanes, planes, H, W = 2, 16, 4, 16, 16
    key = jax.random.PRNGKey(0)
    kx, kp = jax.random.split(key)
    x = jax.random.normal(kx, (N, inplanes, H, W), jnp.float32)   # NCHW like PyTorch
    params = init_params(kp, inplanes, planes)

    out = jax.block_until_ready(bottleneck_forward(x, params))
    assert out.shape == (N, planes * 4, H, W)

    ref = reference_forward(x, params)
    err = float(jnp.max(jnp.abs(out - ref)))
    # bf16 MXU inputs (with folded BN scales) vs the f32 HIGHEST-precision reference.
    assert jnp.allclose(out, ref, rtol=2e-2, atol=2e-2), f"max abs err {err}"
    print("KERNEL_OK")
</pallas_src>

<mosaic_0001>
module attributes {stable_mosaic.version = 11 : i64} {
  func.func @_bottleneck_fused_kernel(%arg0: i32, %arg1: i32, %arg2: memref<1x16x16x16xf32, #tpu.memory_space<vmem>>, %arg3: memref<16x4xbf16, #tpu.memory_space<vmem>>, %arg4: memref<36x4xbf16, #tpu.memory_space<vmem>>, %arg5: memref<4x16xbf16, #tpu.memory_space<vmem>>, %arg6: memref<1x4xf32, #tpu.memory_space<vmem>>, %arg7: memref<1x4xf32, #tpu.memory_space<vmem>>, %arg8: memref<1x16xf32, #tpu.memory_space<vmem>>, %arg9: memref<1x8x16x16xf32, #tpu.memory_space<vmem>>, %arg10: memref<10x32x4xbf16, #tpu.memory_space<vmem>>) attributes {dimension_semantics = [#tpu.dimension_semantics<parallel>, #tpu.dimension_semantics<parallel>], iteration_bounds = array<i64: 2, 2>, scalar_prefetch = 0 : i64, scratch_operands = 1 : i64, tpu.core_type = #tpu.core_type<tc>, window_params = [{transform_indices = @transform_0, window_bounds = array<i64: 1, 16, 16, 16>}, {pipeline_mode = #tpu.pipeline_mode<synchronous>, transform_indices = @transform_1, window_bounds = array<i64: 16, 4>}, {pipeline_mode = #tpu.pipeline_mode<synchronous>, transform_indices = @transform_2, window_bounds = array<i64: 36, 4>}, {pipeline_mode = #tpu.pipeline_mode<synchronous>, transform_indices = @transform_3, window_bounds = array<i64: 4, 16>}, {pipeline_mode = #tpu.pipeline_mode<synchronous>, transform_indices = @transform_4, window_bounds = array<i64: 1, 4>}, {pipeline_mode = #tpu.pipeline_mode<synchronous>, transform_indices = @transform_5, window_bounds = array<i64: 1, 4>}, {pipeline_mode = #tpu.pipeline_mode<synchronous>, transform_indices = @transform_6, window_bounds = array<i64: 1, 16>}, {transform_indices = @transform_7, window_bounds = array<i64: 1, 8, 16, 16>}]} {
    %c8_i32 = arith.constant 8 : i32
    %0 = arith.muli %arg1, %c8_i32 : i32
    %1 = tpu.assume_multiple %0, 8 : i32
    %c0 = arith.constant 0 : index
    %2 = arith.index_cast %1 : i32 to index
    %c0_0 = arith.constant 0 : index
    %c0_1 = arith.constant 0 : index
    %3 = vector.load %arg2[%c0, %2, %c0_0, %c0_1] : memref<1x16x16x16xf32, #tpu.memory_space<vmem>>, vector<1x8x16x16xf32>
    %4 = vector.shape_cast %3 : vector<1x8x16x16xf32> to vector<8x16x16xf32>
    %5 = vector.shape_cast %4 : vector<8x16x16xf32> to vector<128x16xf32>
    %6 = arith.truncf %5 : vector<128x16xf32> to vector<128x16xbf16>
    %c0_2 = arith.constant 0 : index
    %c0_3 = arith.constant 0 : index
    %7 = vector.load %arg3[%c0_2, %c0_3] : memref<16x4xbf16, #tpu.memory_space<vmem>>, vector<16x4xbf16>
    %cst = arith.constant dense<0.000000e+00> : vector<128x4xf32>
    %8 = tpu.matmul %6, %7, %cst {dimension_numbers = #tpu.dot_dimension_numbers<[1], [0], [0], [1], [0, 0, 1, 1], [], []>} : vector<128x16xbf16>, vector<16x4xbf16>, vector<128x4xf32> -> vector<128x4xf32>
    %c0_4 = arith.constant 0 : index
    %c0_5 = arith.constant 0 : index
    %9 = vector.load %arg6[%c0_4, %c0_5] : memref<1x4xf32, #tpu.memory_space<vmem>>, vector<1x4xf32>
    %10 = vector.broadcast %9 : vector<1x4xf32> to vector<128x4xf32>
    %11 = arith.addf %8, %10 : vector<128x4xf32>
    %cst_6 = arith.constant 0.000000e+00 : f32
    %12 = vector.broadcast %cst_6 : f32 to vector<128x4xf32>
    %13 = arith.maximumf %11, %12 : vector<128x4xf32>
    %c1_i32 = arith.constant 1 : i32
    %14 = arith.subi %1, %c1_i32 : i32
    %c0_i32 = arith.constant 0 : i32
    %15 = arith.maxsi %14, %c0_i32 : i32
    %c0_7 = arith.constant 0 : index
    %16 = arith.index_cast %15 : i32 to index
    %c0_8 = arith.constant 0 : index
    %c0_9 = arith.constant 0 : index
    %17 = vector.load %arg2[%c0_7, %16, %c0_8, %c0_9] : memref<1x16x16x16xf32, #tpu.memory_space<vmem>>, vector<1x1x16x16xf32>
    %18 = vector.shape_cast %17 : vector<1x1x16x16xf32> to vector<1x16x16xf32>
    %c8_i32_10 = arith.constant 8 : i32
    %19 = arith.addi %1, %c8_i32_10 : i32
    %c15_i32 = arith.constant 15 : i32
    %20 = arith.minsi %19, %c15_i32 : i32
    %c0_11 = arith.constant 0 : index
    %21 = arith.index_cast %20 : i32 to index
    %c0_12 = arith.constant 0 : index
    %c0_13 = arith.constant 0 : index
    %22 = vector.load %arg2[%c0_11, %21, %c0_12, %c0_13] : memref<1x16x16x16xf32, #tpu.memory_space<vmem>>, vector<1x1x16x16xf32>
    %23 = vector.shape_cast %22 : vector<1x1x16x16xf32> to vector<1x16x16xf32>
    %24 = tpu.concatenate %18, %23 in 0 : vector<1x16x16xf32>, vector<1x16x16xf32> -> vector<2x16x16xf32>
    %25 = vector.shape_cast %24 : vector<2x16x16xf32> to vector<32x16xf32>
    %26 = arith.truncf %25 : vector<32x16xf32> to vector<32x16xbf16>
    %c0_14 = arith.constant 0 : index
    %c0_15 = arith.constant 0 : index
    %27 = vector.load %arg3[%c0_14, %c0_15] : memref<16x4xbf16, #tpu.memory_space<vmem>>, vector<16x4xbf16>
    %cst_16 = arith.constant dense<0.000000e+00> : vector<32x4xf32>
    %28 = tpu.matmul %26, %27, %cst_16 {dimension_numbers = #tpu.dot_dimension_numbers<[1], [0], [0], [1], [0, 0, 1, 1], [], []>} : vector<32x16xbf16>, vector<16x4xbf16>, vector<32x4xf32> -> vector<32x4xf32>
    %c0_17 = arith.constant 0 : index
    %c0_18 = arith.constant 0 : index
    %29 = vector.load %arg6[%c0_17, %c0_18] : memref<1x4xf32, #tpu.memory_space<vmem>>, vector<1x4xf32>
    %30 = vector.broadcast %29 : vector<1x4xf32> to vector<32x4xf32>
    %31 = arith.addf %28, %30 : vector<32x4xf32>
    %cst_19 = arith.constant 0.000000e+00 : f32
    %32 = vector.broadcast %cst_19 : f32 to vector<32x4xf32>
    %33 = arith.maximumf %31, %32 : vector<32x4xf32>
    %34 = vector.shape_cast %33 : vector<32x4xf32> to vector<2x16x4xf32>
    %c0_i32_20 = arith.constant 0 : i32
    %35 = arith.cmpi sgt, %arg1, %c0_i32_20 : i32
    %36 = vector.extract_strided_slice %34 {offsets = [0, 0, 0], sizes = [1, 16, 4], strides = [1, 1, 1]} : vector<2x16x4xf32> to vector<1x16x4xf32>
    %37 = vector.shape_cast %36 : vector<1x16x4xf32> to vector<16x4xf32>
    %cst_21 = arith.constant 0.000000e+00 : f32
    %38 = vector.broadcast %cst_21 : f32 to vector<16x4xf32>
    %39 = arith.select %35, %37, %38 : vector<16x4xf32>
    %c1_i32_22 = arith.constant 1 : i32
    %40 = arith.cmpi slt, %arg1, %c1_i32_22 : i32
    %41 = vector.extract_strided_slice %34 {offsets = [1, 0, 0], sizes = [1, 16, 4], strides = [1, 1, 1]} : vector<2x16x4xf32> to vector<1x16x4xf32>
    %42 = vector.shape_cast %41 : vector<1x16x4xf32> to vector<16x4xf32>
    %cst_23 = arith.constant 0.000000e+00 : f32
    %43 = vector.broadcast %cst_23 : f32 to vector<16x4xf32>
    %44 = arith.select %40, %42, %43 : vector<16x4xf32>
    %45 = vector.shape_cast %39 : vector<16x4xf32> to vector<1x16x4xf32>
    %46 = vector.shape_cast %13 : vector<128x4xf32> to vector<8x16x4xf32>
    %47 = vector.shape_cast %44 : vector<16x4xf32> to vector<1x16x4xf32>
    %48 = tpu.concatenate %45, %46, %47 in 0 : vector<1x16x4xf32>, vector<8x16x4xf32>, vector<1x16x4xf32> -> vector<10x16x4xf32>
    %49 = arith.truncf %48 : vector<10x16x4xf32> to vector<10x16x4xbf16>
    %cst_24 = arith.constant 0.000000e+00 : bf16
    %50 = vector.broadcast %cst_24 : bf16 to vector<10x1x4xbf16>
    %cst_25 = arith.constant 0.000000e+00 : bf16
    %51 = vector.broadcast %cst_25 : bf16 to vector<10x15x4xbf16>
    %52 = tpu.concatenate %50, %49, %51 in 1 : vector<10x1x4xbf16>, vector<10x16x4xbf16>, vector<10x15x4xbf16> -> vector<10x32x4xbf16>
    %c0_26 = arith.constant 0 : index
    %c0_27 = arith.constant 0 : index
    %c0_28 = arith.constant 0 : index
    %53 = vector.load %arg10[%c0_26, %c0_27, %c0_28] : memref<10x32x4xbf16, #tpu.memory_space<vmem>>, vector<10x32x4xbf16>
    tpu.vector_store %arg10[%c0_26, %c0_27, %c0_28], %52 {strides = array<i32>} : memref<10x32x4xbf16, #tpu.memory_space<vmem>>, vector<10x32x4xbf16>,
    %c0_29 = arith.constant 0 : index
    %c0_30 = arith.constant 0 : index
    %c0_31 = arith.constant 0 : index
    %54 = vector.load %arg10[%c0_29, %c0_30, %c0_31] : memref<10x32x4xbf16, #tpu.memory_space<vmem>>, vector<8x16x4xbf16>
    %55 = vector.shape_cast %54 : vector<8x16x4xbf16> to vector<128x4xbf16>
    %c0_32 = arith.constant 0 : index
    %c1 = arith.constant 1 : index
    %c0_33 = arith.constant 0 : index
    %56 = vector.load %arg10[%c0_32, %c1, %c0_33] : memref<10x32x4xbf16, #tpu.memory_space<vmem>>, vector<8x16x4xbf16>
    %57 = vector.shape_cast %56 : vector<8x16x4xbf16> to vector<128x4xbf16>
    %c0_34 = arith.constant 0 : index
    %c2 = arith.constant 2 : index
    %c0_35 = arith.constant 0 : index
    %58 = vector.load %arg10[%c0_34, %c2, %c0_35] : memref<10x32x4xbf16, #tpu.memory_space<vmem>>, vector<8x16x4xbf16>
    %59 = vector.shape_cast %58 : vector<8x16x4xbf16> to vector<128x4xbf16>
    %c1_36 = arith.constant 1 : index
    %c0_37 = arith.constant 0 : index
    %c0_38 = arith.constant 0 : index
    %60 = vector.load %arg10[%c1_36, %c0_37, %c0_38] : memref<10x32x4xbf16, #tpu.memory_space<vmem>>, vector<8x16x4xbf16>
    %61 = vector.shape_cast %60 : vector<8x16x4xbf16> to vector<128x4xbf16>
    %c1_39 = arith.constant 1 : index
    %c1_40 = arith.constant 1 : index
    %c0_41 = arith.constant 0 : index
    %62 = vector.load %arg10[%c1_39, %c1_40, %c0_41] : memref<10x32x4xbf16, #tpu.memory_space<vmem>>, vector<8x16x4xbf16>
    %63 = vector.shape_cast %62 : vector<8x16x4xbf16> to vector<128x4xbf16>
    %c1_42 = arith.constant 1 : index
    %c2_43 = arith.constant 2 : index
    %c0_44 = arith.constant 0 : index
    %64 = vector.load %arg10[%c1_42, %c2_43, %c0_44] : memref<10x32x4xbf16, #tpu.memory_space<vmem>>, vector<8x16x4xbf16>
    %65 = vector.shape_cast %64 : vector<8x16x4xbf16> to vector<128x4xbf16>
    %c2_45 = arith.constant 2 : index
    %c0_46 = arith.constant 0 : index
    %c0_47 = arith.constant 0 : index
    %66 = vector.load %arg10[%c2_45, %c0_46, %c0_47] : memref<10x32x4xbf16, #tpu.memory_space<vmem>>, vector<8x16x4xbf16>
    %67 = vector.shape_cast %66 : vector<8x16x4xbf16> to vector<128x4xbf16>
    %c2_48 = arith.constant 2 : index
    %c1_49 = arith.constant 1 : index
    %c0_50 = arith.constant 0 : index
    %68 = vector.load %arg10[%c2_48, %c1_49, %c0_50] : memref<10x32x4xbf16, #tpu.memory_space<vmem>>, vector<8x16x4xbf16>
    %69 = vector.shape_cast %68 : vector<8x16x4xbf16> to vector<128x4xbf16>
    %c2_51 = arith.constant 2 : index
    %c2_52 = arith.constant 2 : index
    %c0_53 = arith.constant 0 : index
    %70 = vector.load %arg10[%c2_51, %c2_52, %c0_53] : memref<10x32x4xbf16, #tpu.memory_space<vmem>>, vector<8x16x4xbf16>
    %71 = vector.shape_cast %70 : vector<8x16x4xbf16> to vector<128x4xbf16>
    %72 = tpu.concatenate %55, %57, %59, %61, %63, %65, %67, %69, %71 in 1 : vector<128x4xbf16>, vector<128x4xbf16>, vector<128x4xbf16>, vector<128x4xbf16>, vector<128x4xbf16>, vector<128x4xbf16>, vector<128x4xbf16>, vector<128x4xbf16>, vector<128x4xbf16> -> vector<128x36xbf16>
    %c0_54 = arith.constant 0 : index
    %c0_55 = arith.constant 0 : index
    %73 = vector.load %arg4[%c0_54, %c0_55] : memref<36x4xbf16, #tpu.memory_space<vmem>>, vector<36x4xbf16>
    %cst_56 = arith.constant dense<0.000000e+00> : vector<128x4xf32>
    %74 = tpu.matmul %72, %73, %cst_56 {dimension_numbers = #tpu.dot_dimension_numbers<[1], [0], [0], [1], [0, 0, 1, 1], [], []>} : vector<128x36xbf16>, vector<36x4xbf16>, vector<128x4xf32> -> vector<128x4xf32>
    %c0_57 = arith.constant 0 : index
    %c0_58 = arith.constant 0 : index
    %75 = vector.load %arg7[%c0_57, %c0_58] : memref<1x4xf32, #tpu.memory_space<vmem>>, vector<1x4xf32>
    %76 = vector.broadcast %75 : vector<1x4xf32> to vector<128x4xf32>
    %77 = arith.addf %74, %76 : vector<128x4xf32>
    %cst_59 = arith.constant 0.000000e+00 : f32
    %78 = vector.broadcast %cst_59 : f32 to vector<128x4xf32>
    %79 = arith.maximumf %77, %78 : vector<128x4xf32>
    %80 = arith.truncf %79 : vector<128x4xf32> to vector<128x4xbf16>
    %c0_60 = arith.constant 0 : index
    %c0_61 = arith.constant 0 : index
    %81 = vector.load %arg5[%c0_60, %c0_61] : memref<4x16xbf16, #tpu.memory_space<vmem>>, vector<4x16xbf16>
    %cst_62 = arith.constant dense<0.000000e+00> : vector<128x16xf32>
    %82 = tpu.matmul %80, %81, %cst_62 {dimension_numbers = #tpu.dot_dimension_numbers<[1], [0], [0], [1], [0, 0, 1, 1], [], []>} : vector<128x4xbf16>, vector<4x16xbf16>, vector<128x16xf32> -> vector<128x16xf32>
    %c0_63 = arith.constant 0 : index
    %c0_64 = arith.constant 0 : index
    %83 = vector.load %arg8[%c0_63, %c0_64] : memref<1x16xf32, #tpu.memory_space<vmem>>, vector<1x16xf32>
    %84 = vector.broadcast %83 : vector<1x16xf32> to vector<128x16xf32>
    %85 = arith.addf %82, %84 : vector<128x16xf32>
    %86 = arith.addf %85, %5 : vector<128x16xf32>
    %cst_65 = arith.constant 0.000000e+00 : f32
    %87 = vector.broadcast %cst_65 : f32 to vector<128x16xf32>
    %88 = arith.maximumf %86, %87 : vector<128x16xf32>
    %89 = vector.shape_cast %88 : vector<128x16xf32> to vector<8x16x16xf32>
    %c0_66 = arith.constant 0 : index
    %c0_67 = arith.constant 0 : index
    %c0_68 = arith.constant 0 : index
    %c0_69 = arith.constant 0 : index
    %90 = vector.load %arg9[%c0_66, %c0_67, %c0_68, %c0_69] : memref<1x8x16x16xf32, #tpu.memory_space<vmem>>, vector<1x8x16x16xf32>
    %91 = vector.shape_cast %90 : vector<1x8x16x16xf32> to vector<8x16x16xf32>
    %92 = vector.shape_cast %89 : vector<8x16x16xf32> to vector<1x8x16x16xf32>
    tpu.vector_store %arg9[%c0_66, %c0_67, %c0_68, %c0_69], %92 {strides = array<i32>} : memref<1x8x16x16xf32, #tpu.memory_space<vmem>>, vector<1x8x16x16xf32>,
    return
  }
  func.func @transform_0(%arg0: i32, %arg1: i32) -> (i32, i32, i32, i32) {
    %c0_i32 = arith.constant 0 : i32
    %c0_i32_0 = arith.constant 0 : i32
    %c0_i32_1 = arith.constant 0 : i32
    %c0_i32_2 = arith.constant 0 : i32
    return %arg0, %c0_i32, %c0_i32_0, %c0_i32_1 : i32, i32, i32, i32
  }
  func.func @transform_1(%arg0: i32, %arg1: i32) -> (i32, i32) {
    %c0_i32 = arith.constant 0 : i32
    %c0_i32_0 = arith.constant 0 : i32
    %c0_i32_1 = arith.constant 0 : i32
    return %c0_i32, %c0_i32_0 : i32, i32
  }
  func.func @transform_2(%arg0: i32, %arg1: i32) -> (i32, i32) {
    %c0_i32 = arith.constant 0 : i32
    %c0_i32_0 = arith.constant 0 : i32
    %c0_i32_1 = arith.constant 0 : i32
    return %c0_i32, %c0_i32_0 : i32, i32
  }
  func.func @transform_3(%arg0: i32, %arg1: i32) -> (i32, i32) {
    %c0_i32 = arith.constant 0 : i32
    %c0_i32_0 = arith.constant 0 : i32
    %c0_i32_1 = arith.constant 0 : i32
    return %c0_i32, %c0_i32_0 : i32, i32
  }
  func.func @transform_4(%arg0: i32, %arg1: i32) -> (i32, i32) {
    %c0_i32 = arith.constant 0 : i32
    %c0_i32_0 = arith.constant 0 : i32
    %c0_i32_1 = arith.constant 0 : i32
    return %c0_i32, %c0_i32_0 : i32, i32
  }
  func.func @transform_5(%arg0: i32, %arg1: i32) -> (i32, i32) {
    %c0_i32 = arith.constant 0 : i32
    %c0_i32_0 = arith.constant 0 : i32
    %c0_i32_1 = arith.constant 0 : i32
    return %c0_i32, %c0_i32_0 : i32, i32
  }
  func.func @transform_6(%arg0: i32, %arg1: i32) -> (i32, i32) {
    %c0_i32 = arith.constant 0 : i32
    %c0_i32_0 = arith.constant 0 : i32
    %c0_i32_1 = arith.constant 0 : i32
    return %c0_i32, %c0_i32_0 : i32, i32
  }
  func.func @transform_7(%arg0: i32, %arg1: i32) -> (i32, i32, i32, i32) {
    %c0_i32 = arith.constant 0 : i32
    %c0_i32_0 = arith.constant 0 : i32
    %c0_i32_1 = arith.constant 0 : i32
    return %arg0, %arg1, %c0_i32, %c0_i32_0 : i32, i32, i32, i32
  }
}

</mosaic_0001>

<llo_original>
// kernel: tpu_custom_call.1
$region0: #{tpu_custom_call.1}
  #allocation0 [shape = 'u32[]', space=smem, size = 0x4, offset = 0x4, fixed_abs, tag = 'smem constant byte address 0x4 - core index']
  #allocation1 [shape = 'u32[144,128]{1,0:T(1,128)}', space=vmem, size = 0x12000, scoped, tag = 'internal scratch']
  #allocation2 [shape = 'bf16[10,32,4]{2,1,0:T(8,128)(2,1)}', space=vmem, size = 0x14000, scoped, tag = 'scratch operand']
  %s0 = inlined_call_operand.hbm [shape: f32[2,16,16,16], index: 0, kind: input, shape index: {}]
  %s1 = inlined_call_operand.vmem [shape: bf16[16,4], index: 1, kind: input, shape index: {}]
  %s2 = inlined_call_operand.vmem [shape: bf16[36,4], index: 2, kind: input, shape index: {}]
  %s3 = inlined_call_operand.vmem [shape: bf16[4,16], index: 3, kind: input, shape index: {}]
  %s4 = inlined_call_operand.vmem [shape: f32[1,4], index: 4, kind: input, shape index: {}]
  %s5 = inlined_call_operand.vmem [shape: f32[1,4], index: 5, kind: input, shape index: {}]
  %s6 = inlined_call_operand.vmem [shape: f32[1,16], index: 6, kind: input, shape index: {}]
  %s7 = inlined_call_operand.hbm [shape: f32[2,16,16,16], index: 7, kind: output, shape index: {}]
  %s8 = sld [smem:[#allocation0]]
  $region65: #{tpu_custom_call.1} parent=0
    _
  %s10 = ssub.s32 1, %s8
  %s11 = scalar_select 0, %s10, %s8
  $region1: #{tpu_custom_call.1} parent=0
    #allocation3 [shape = 'u8[262144]{0}', space=vmem, size = 0x40000, scoped, tag = 'input window, operand 0']
    #allocation4 [shape = 's32[2]{0}', space=sflag, size = 0x8, scoped, tag = 'scoped memory for tpu_custom_call.1']
    #allocation5 [shape = 's32[2]{0}', space=sflag, size = 0x8, scoped, tag = 'scoped memory for tpu_custom_call.1']
    #allocation6 [shape = 'u8[131072]{0}', space=vmem, size = 0x20000, scoped, tag = 'output window, operand 0']
    %12 = vsyncpa [#allocation4], 0
    %s13 = scalar_lea.sflag [#allocation4], 1
    %14 = vsyncpa %s13, 0
    %15 = vsyncpa [#allocation5], 0
    %s16 = scalar_lea.sflag [#allocation5], 1
    %17 = vsyncpa %s16, 0
    loop: start=0, step=1, limit=6
    $region2: #{tpu_custom_call.1} parent=1 // loop_pre_header
      _
    $region3: #{tpu_custom_call.1} parent=1 // loop_header
      %s19 = sphi 0, %s23
      %p20 = scmp.ge.s32.totalorder %s19, 6
      %s26 = sphi 0, %s38
      %s27 = sphi 0, %s34
      %s28 = sphi 0, %s26
      %s29 = sphi 0, %s27
      %s30 = sphi 0, %s28
      %s31 = sphi 0, %s29
      %s41 = sphi 0, %s43
      %s44 = sphi 0, %s41
      %s45 = sphi 0, %s44
      %s61 = sphi 0, %s45
      %s65 = sphi 0, %s65
      %s67 = sphi 0, %s65
      %s68 = sphi 0, %s67
      %s82 = sphi 0, %s68
      %s86 = sphi 0, %s86
      %s88 = sphi 0, %s86
      %s89 = sphi 0, %s88
      %s103 = sphi 0, %s89
      %s107 = sphi 0, %s107
      %s109 = sphi 0, %s107
      %s110 = sphi 0, %s109
      %s124 = sphi 0, %s110
      %s128 = sphi 0, %s128
      %s130 = sphi 0, %s128
      %s131 = sphi 0, %s130
      %s145 = sphi 0, %s131
      %s149 = sphi 0, %s149
      %s151 = sphi 0, %s149
      %s152 = sphi 0, %s151
      %s166 = sphi 0, %s152
      %s170 = sphi 0, %s170
      %s172 = sphi 0, %s170
      %s173 = sphi 0, %s172
      %s187 = sphi 0, %s173
      %s195 = sphi 0, %s197
      %s198 = sphi 0, %s195
      %s199 = sphi 0, %s198
      %s215 = sphi 0, %s199
    $region4: #{tpu_custom_call.1} parent=1 // loop_header_branch
      %22 = sbr.rel (%p20) target = $region8
    $region5: #{tpu_custom_call.1} parent=1 // loop_body
      %s24 = ssub.s32 %s19, 1
      %s25 = ssub.s32 %s19, 2
      %s32 = sadd.s32 1, %s27
      %p33 = scmp.ge.s32.totalorder %s32, 2
      %s34 = scalar_select %p33, 0, %s32
      %s35 = sadd.s32 1, %s26
      %s36 = scalar_select %p33, %s35, %s26
      %p37 = scmp.ge.s32.totalorder %s36, 2
      %s38 = scalar_select %p37, 0, %s36
      %s39 = ssub.s32 %s26, %s38
      %p40 = scmp.eq.s32.totalorder %s39, 0
      %s42 = sadd.s32 %s41, 1
      %s43 = scalar_select %p40, %s41, %s42
      %p46 = pneg %p40
      %p47 = scmp.eq.s32.totalorder %s19, 3
      %p48 = por %p46, %p47
      %p49 = scmp.ne.s32.totalorder %s41, %s44
      %p50 = scmp.eq.s32.totalorder %s19, 0
      %p51 = por %p49, %p50
      %p52 = scmp.ne.s32.totalorder %s41, %s44
      %p53 = scmp.eq.s32.totalorder %s24, 3
      %p54 = por %p52, %p53
      %p55 = scmp.ne.s32.totalorder %s44, %s45
      %p56 = scmp.eq.s32.totalorder %s24, 0
      %p57 = por %p55, %p56
      %p58 = scmp.ne.s32.totalorder %s44, %s45
      %p59 = scmp.eq.s32.totalorder %s25, 3
      %p60 = por %p58, %p59
      %p62 = scmp.ne.s32.totalorder %s45, %s61
      %p63 = scmp.eq.s32.totalorder %s25, 0
      %p64 = por %p62, %p63
      %s66 = sadd.s32 %s65, 1
      %p69 = scmp.eq.s32.totalorder %s19, 3
      %p70 = scmp.ne.s32.totalorder %s65, %s67
      %p71 = scmp.eq.s32.totalorder %s19, 0
      %p72 = por %p70, %p71
      %p73 = scmp.ne.s32.totalorder %s65, %s67
      %p74 = scmp.eq.s32.totalorder %s24, 3
      %p75 = por %p73, %p74
      %p76 = scmp.ne.s32.totalorder %s67, %s68
      %p77 = scmp.eq.s32.totalorder %s24, 0
      %p78 = por %p76, %p77
      %p79 = scmp.ne.s32.totalorder %s67, %s68
      %p80 = scmp.eq.s32.totalorder %s25, 3
      %p81 = por %p79, %p80
      %p83 = scmp.ne.s32.totalorder %s68, %s82
      %p84 = scmp.eq.s32.totalorder %s25, 0
      %p85 = por %p83, %p84
      %s87 = sadd.s32 %s86, 1
      %p90 = scmp.eq.s32.totalorder %s19, 3
      %p91 = scmp.ne.s32.totalorder %s86, %s88
      %p92 = scmp.eq.s32.totalorder %s19, 0
      %p93 = por %p91, %p92
      %p94 = scmp.ne.s32.totalorder %s86, %s88
      %p95 = scmp.eq.s32.totalorder %s24, 3
      %p96 = por %p94, %p95
      %p97 = scmp.ne.s32.totalorder %s88, %s89
      %p98 = scmp.eq.s32.totalorder %s24, 0
      %p99 = por %p97, %p98
      %p100 = scmp.ne.s32.totalorder %s88, %s89
      %p101 = scmp.eq.s32.totalorder %s25, 3
      %p102 = por %p100, %p101
      %p104 = scmp.ne.s32.totalorder %s89, %s103
      %p105 = scmp.eq.s32.totalorder %s25, 0
      %p106 = por %p104, %p105
      %s108 = sadd.s32 %s107, 1
      %p111 = scmp.eq.s32.totalorder %s19, 3
      %p112 = scmp.ne.s32.totalorder %s107, %s109
      %p113 = scmp.eq.s32.totalorder %s19, 0
      %p114 = por %p112, %p113
      %p115 = scmp.ne.s32.totalorder %s107, %s109
      %p116 = scmp.eq.s32.totalorder %s24, 3
      %p117 = por %p115, %p116
      %p118 = scmp.ne.s32.totalorder %s109, %s110
      %p119 = scmp.eq.s32.totalorder %s24, 0
      %p120 = por %p118, %p119
      %p121 = scmp.ne.s32.totalorder %s109, %s110
      %p122 = scmp.eq.s32.totalorder %s25, 3
      %p123 = por %p121, %p122
      %p125 = scmp.ne.s32.totalorder %s110, %s124
      %p126 = scmp.eq.s32.totalorder %s25, 0
      %p127 = por %p125, %p126
      %s129 = sadd.s32 %s128, 1
      %p132 = scmp.eq.s32.totalorder %s19, 3
      %p133 = scmp.ne.s32.totalorder %s128, %s130
      %p134 = scmp.eq.s32.totalorder %s19, 0
      %p135 = por %p133, %p134
      %p136 = scmp.ne.s32.totalorder %s128, %s130
      %p137 = scmp.eq.s32.totalorder %s24, 3
      %p138 = por %p136, %p137
      %p139 = scmp.ne.s32.totalorder %s130, %s131
      %p140 = scmp.eq.s32.totalorder %s24, 0
      %p141 = por %p139, %p140
      %p142 = scmp.ne.s32.totalorder %s130, %s131
      %p143 = scmp.eq.s32.totalorder %s25, 3
      %p144 = por %p142, %p143
      %p146 = scmp.ne.s32.totalorder %s131, %s145
      %p147 = scmp.eq.s32.totalorder %s25, 0
      %p148 = por %p146, %p147
      %s150 = sadd.s32 %s149, 1
      %p153 = scmp.eq.s32.totalorder %s19, 3
      %p154 = scmp.ne.s32.totalorder %s149, %s151
      %p155 = scmp.eq.s32.totalorder %s19, 0
      %p156 = por %p154, %p155
      %p157 = scmp.ne.s32.totalorder %s149, %s151
      %p158 = scmp.eq.s32.totalorder %s24, 3
      %p159 = por %p157, %p158
      %p160 = scmp.ne.s32.totalorder %s151, %s152
      %p161 = scmp.eq.s32.totalorder %s24, 0
      %p162 = por %p160, %p161
      %p163 = scmp.ne.s32.totalorder %s151, %s152
      %p164 = scmp.eq.s32.totalorder %s25, 3
      %p165 = por %p163, %p164
      %p167 = scmp.ne.s32.totalorder %s152, %s166
      %p168 = scmp.eq.s32.totalorder %s25, 0
      %p169 = por %p167, %p168
      %s171 = sadd.s32 %s170, 1
      %p174 = scmp.eq.s32.totalorder %s19, 3
      %p175 = scmp.ne.s32.totalorder %s170, %s172
      %p176 = scmp.eq.s32.totalorder %s19, 0
      %p177 = por %p175, %p176
      %p178 = scmp.ne.s32.totalorder %s170, %s172
      %p179 = scmp.eq.s32.totalorder %s24, 3
      %p180 = por %p178, %p179
      %p181 = scmp.ne.s32.totalorder %s172, %s173
      %p182 = scmp.eq.s32.totalorder %s24, 0
      %p183 = por %p181, %p182
      %p184 = scmp.ne.s32.totalorder %s172, %s173
      %p185 = scmp.eq.s32.totalorder %s25, 3
      %p186 = por %p184, %p185
      %p188 = scmp.ne.s32.totalorder %s173, %s187
      %p189 = scmp.eq.s32.totalorder %s25, 0
      %p190 = por %p188, %p189
      %s191 = ssub.s32 %s26, %s38
      %s192 = ssub.s32 %s27, %s34
      %s193 = sor.u32 %s191, %s192
      %p194 = scmp.eq.s32.totalorder %s193, 0
      %s196 = sadd.s32 %s195, 1
      %s197 = scalar_select %p194, %s195, %s196
      %p200 = pneg %p194
      %p201 = scmp.eq.s32.totalorder %s19, 3
      %p202 = por %p200, %p201
      %p203 = scmp.ne.s32.totalorder %s195, %s198
      %p204 = scmp.eq.s32.totalorder %s19, 0
      %p205 = por %p203, %p204
      %p206 = scmp.ne.s32.totalorder %s195, %s198
      %p207 = scmp.eq.s32.totalorder %s24, 3
      %p208 = por %p206, %p207
      %p209 = scmp.ne.s32.totalorder %s198, %s199
      %p210 = scmp.eq.s32.totalorder %s24, 0
      %p211 = por %p209, %p210
      %p212 = scmp.ne.s32.totalorder %s198, %s199
      %p213 = scmp.eq.s32.totalorder %s25, 3
      %p214 = por %p212, %p213
      %p216 = scmp.ne.s32.totalorder %s199, %s215
      %p217 = scmp.eq.s32.totalorder %s25, 0
      %p218 = por %p216, %p217
      %p219 = scmp.le.s32.totalorder 1, %s19
      %p220 = scmp.lt.s32.totalorder %s19, 5
      %p221 = pnand %p219, %p220
      %p222 = pneg %p221
      // Predicated region
      $region9: #{tpu_custom_call.1} parent=5 // pred_check
        _
      $region10: #{tpu_custom_call.1} parent=5 // pred_check_branch
        %224 = sbr.rel (%p221) target = $region12
      $region11: #{tpu_custom_call.1} parent=5 // pred_region
        %s225 = ssub.s32 %s19, 1
        // Predicated region
        $region13: #{tpu_custom_call.1} parent=11 // pred_check
          %p226 = pneg %p78
        $region14: #{tpu_custom_call.1} parent=11 // pred_check_branch
          %228 = sbr.rel (%p226) target = $region16
        $region15: #{tpu_custom_call.1} parent=11 // pred_region
          _
        $region16: #{tpu_custom_call.1} parent=11 // pred_fallthru
          _
        // Predicated region
        $region17: #{tpu_custom_call.1} parent=11 // pred_check
          %p229 = pneg %p99
        $region18: #{tpu_custom_call.1} parent=11 // pred_check_branch
          %231 = sbr.rel (%p229) target = $region20
        $region19: #{tpu_custom_call.1} parent=11 // pred_region
          _
        $region20: #{tpu_custom_call.1} parent=11 // pred_fallthru
          _
        // Predicated region
        $region21: #{tpu_custom_call.1} parent=11 // pred_check
          %p232 = pneg %p120
        $region22: #{tpu_custom_call.1} parent=11 // pred_check_branch
          %234 = sbr.rel (%p232) target = $region24
        $region23: #{tpu_custom_call.1} parent=11 // pred_region
          _
        $region24: #{tpu_custom_call.1} parent=11 // pred_fallthru
          _
        // Predicated region
        $region25: #{tpu_custom_call.1} parent=11 // pred_check
          %p235 = pneg %p141
        $region26: #{tpu_custom_call.1} parent=11 // pred_check_branch
          %237 = sbr.rel (%p235) target = $region28
        $region27: #{tpu_custom_call.1} parent=11 // pred_region
          _
        $region28: #{tpu_custom_call.1} parent=11 // pred_fallthru
          _
        // Predicated region
        $region29: #{tpu_custom_call.1} parent=11 // pred_check
          %p238 = pneg %p162
        $region30: #{tpu_custom_call.1} parent=11 // pred_check_branch
          %240 = sbr.rel (%p238) target = $region32
        $region31: #{tpu_custom_call.1} parent=11 // pred_region
          _
        $region32: #{tpu_custom_call.1} parent=11 // pred_fallthru
          _
        // Predicated region
        $region33: #{tpu_custom_call.1} parent=11 // pred_check
          %p241 = pneg %p183
        $region34: #{tpu_custom_call.1} parent=11 // pred_check_branch
          %243 = sbr.rel (%p241) target = $region36
        $region35: #{tpu_custom_call.1} parent=11 // pred_region
          _
        $region36: #{tpu_custom_call.1} parent=11 // pred_fallthru
          _
      $region12: #{tpu_custom_call.1} parent=5 // pred_fallthru
        _
      %p244 = scmp.lt.s32.totalorder %s19, 4
      // Predicated region
      $region37: #{tpu_custom_call.1} parent=5 // pred_check
        %p245 = pneg %p244
      $region38: #{tpu_custom_call.1} parent=5 // pred_check_branch
        %247 = sbr.rel (%p245) target = $region40
      $region39: #{tpu_custom_call.1} parent=5 // pred_region
        // Predicated region
        $region41: #{tpu_custom_call.1} parent=39 // pred_check
          %p248 = pneg %p51
        $region42: #{tpu_custom_call.1} parent=39 // pred_check_branch
          %250 = sbr.rel (%p248) target = $region44
        $region43: #{tpu_custom_call.1} parent=39 // pred_region
          %s251 = sand.u32 %s41, 1
          %s252 = scalar_lea.sflag [#allocation4], %s251
          %s253 = sand.u32 %s41, 1
          %s254 = smul.addr %s253, 256
          %s255 = scalar_lea.vmem [#allocation3], %s254
          %s257 = ssub.s32 4096, 4096
          %258 = vsyncadd %s252, %s257
          %s259 = smul.addr %s26, 32
          %s260 = smul.addr %s259, 128
          %s261 = scalar_lea.hbm %s0, %s260
          %s262 = sshll.u32 %s255, 4
          %s263 = int_to_ptr.vmem [resolvable:$true] %s262
          %268 = dma.hbm_to_vmem [thread:$0]  %s261, 4096, %s263, %s252, 128, 128, 8
        $region44: #{tpu_custom_call.1} parent=39 // pred_fallthru
          _
      $region40: #{tpu_custom_call.1} parent=5 // pred_fallthru
        _
      %p269 = scmp.le.s32.totalorder 1, %s19
      %p270 = scmp.lt.s32.totalorder %s19, 5
      %p271 = pnand %p269, %p270
      %p272 = pneg %p271
      // Predicated region
      $region45: #{tpu_custom_call.1} parent=5 // pred_check
        _
      $region46: #{tpu_custom_call.1} parent=5 // pred_check_branch
        %274 = sbr.rel (%p271) target = $region48
      $region47: #{tpu_custom_call.1} parent=5 // pred_region
        %s275 = ssub.s32 %s19, 1
        %s276 = sand.u32 %s44, 1
        %s277 = scalar_lea.sflag [#allocation4], %s276
        %s278 = sand.u32 %s44, 1
        %s279 = smul.addr %s278, 256
        %s280 = scalar_lea.vmem [#allocation3], %s279
        // Predicated region
        $region49: #{tpu_custom_call.1} parent=47 // pred_check
          %p281 = pneg %p57
        $region50: #{tpu_custom_call.1} parent=47 // pred_check_branch
          %283 = sbr.rel (%p281) target = $region52
        $region51: #{tpu_custom_call.1} parent=47 // pred_region
          %284 = dma.done %s277, 4096
        $region52: #{tpu_custom_call.1} parent=47 // pred_fallthru
          _
        %s285 = sand.u32 %s44, 1
        %s286 = scalar_lea.sflag [#allocation4], %s285
        %s287 = sand.u32 %s44, 1
        %s288 = smul.addr %s287, 256
        %s289 = scalar_lea.vmem [#allocation3], %s288
        %p290 = pneg %p57
        %p291 = pneg %p54
        %p292 = pneg %p78
        %p293 = pneg %p75
        %p294 = pneg %p99
        %p295 = pneg %p96
        %p296 = pneg %p120
        %p297 = pneg %p117
        %p298 = pneg %p141
        %p299 = pneg %p138
        %p300 = pneg %p162
        %p301 = pneg %p159
        %p302 = pneg %p183
        %p303 = pneg %p180
        %p304 = pneg %p211
        %p305 = pneg %p208
        %s306 = sand.u32 %s198, 1
        %s307 = scalar_lea.sflag [#allocation5], %s306
        %s308 = sand.u32 %s198, 1
        %s309 = smul.addr %s308, 128
        %s310 = scalar_lea.vmem [#allocation6], %s309
        %s311 = smul.u32 8, %s29
        %s313 = smul.u32 %s29, 8
        %s314 = smul.u32 %s313, 16
        %s315 = scalar_lea.vmem %s280, %s314 [#allocation3]
        %v316 = vld [vmem:[%s315] sm:$0xff]
        %v317 = vld [vmem:[%s315 + $0x8] sm:$0xff]
        %v318 = vld [vmem:[%s315 + $0x10] sm:$0xff]
        %v319 = vld [vmem:[%s315 + $0x18] sm:$0xff]
        %v320 = vld [vmem:[%s315 + $0x20] sm:$0xff]
        %v321 = vld [vmem:[%s315 + $0x28] sm:$0xff]
        %v322 = vld [vmem:[%s315 + $0x30] sm:$0xff]
        %v323 = vld [vmem:[%s315 + $0x38] sm:$0xff]
        %v324 = vld [vmem:[%s315 + $0x40] sm:$0xff]
        %v325 = vld [vmem:[%s315 + $0x48] sm:$0xff]
        %v326 = vld [vmem:[%s315 + $0x50] sm:$0xff]
        %v327 = vld [vmem:[%s315 + $0x58] sm:$0xff]
        %v328 = vld [vmem:[%s315 + $0x60] sm:$0xff]
        %v329 = vld [vmem:[%s315 + $0x68] sm:$0xff]
        %v330 = vld [vmem:[%s315 + $0x70] sm:$0xff]
        %v331 = vld [vmem:[%s315 + $0x78] sm:$0xff]
        %v332 = vpack.c.bf16 %v317, %v316
        %v333 = vpack.c.bf16 %v319, %v318
        %v334 = vpack.c.bf16 %v321, %v320
        %v335 = vpack.c.bf16 %v323, %v322
        %v336 = vpack.c.bf16 %v325, %v324
        %v337 = vpack.c.bf16 %v327, %v326
        %v338 = vpack.c.bf16 %v329, %v328
        %v339 = vpack.c.bf16 %v331, %v330
        %v340 = vld [vmem:[%s1] sm:$0xf]
        %v341 = vld [vmem:[%s1 + $0x4] sm:$0xf]
        %v342 = vld [vmem:[%s4] sm:$0x1]
        %v344 = vlaneseq
        %v345 = vshrl.u32 %v344, 7
        %v346 = vsub.s32 0, %v345
        %v347 = vrot.slane %v342, %v346
        %v351 = vunpack.c.l.b16 %v340
        %v352 = vunpack.c.l.b16 %v341
        %v353 = vpack.c.b16 %v352, %v351
        %vm355 = vcmask 130048
        %v357 = vsel %vm355, %v332, 0
        %v360 = vsel %vm355, %v333, 0
        %v363 = vsel %vm355, %v334, 0
        %v366 = vsel %vm355, %v335, 0
        %v369 = vsel %vm355, %v336, 0
        %v372 = vsel %vm355, %v337, 0
        %v375 = vsel %vm355, %v338, 0
        %v378 = vsel %vm355, %v339, 0
        %380 = vmatprep.subr.bf16.mxu0 0
        %381 = vmatpush1.bf16.msra.mxu0 0
        %382 = vmatprep.subr.bf16.mxu0 0
        %383 = vmatpush1.bf16.msra.mxu0 0
        %384 = vmatprep.subr.bf16.mxu0 0
        %385 = vmatpush1.bf16.msra.mxu0 0
        %386 = vmatprep.subr.bf16.mxu0 0
        %387 = vmatpush1.bf16.msra.mxu0 0
        %388 = vmatprep.subr.bf16.mxu0 0
        %389 = vmatpush1.bf16.msra.mxu0 0
        %390 = vmatprep.subr.bf16.mxu0 0
        %391 = vmatpush1.bf16.msra.mxu0 0
        %392 = vmatprep.subr.bf16.mxu0 0
        %393 = vmatpush1.bf16.msra.mxu0 0
        %394 = vmatprep.subr.bf16.mxu0 0
        %395 = vmatpush1.bf16.msra.mxu0 %v353
        %396 = vmatprep.subr.bf16.mxu0 0
        %397 = vmatpush2.bf16.msra.mxu0 0
        %398 = vmatprep.subr.bf16.mxu0 0
        %399 = vmatpush2.bf16.msra.mxu0 0
        %400 = vmatprep.subr.bf16.mxu0 0
        %401 = vmatpush2.bf16.msra.mxu0 0
        %402 = vmatprep.subr.bf16.mxu0 0
        %403 = vmatpush2.bf16.msra.mxu0 0
        %404 = vmatprep.subr.bf16.mxu0 0
        %405 = vmatpush2.bf16.msra.mxu0 0
        %406 = vmatprep.subr.bf16.mxu0 0
        %407 = vmatpush2.bf16.msra.mxu0 0
        %408 = vmatprep.subr.bf16.mxu0 0
        %409 = vmatpush2.bf16.msra.mxu0 0
        %410 = vmatprep.subr.bf16.mxu0 0
        %411 = vmatpush2.bf16.msra.mxu0 0
        %412 = vmatprep.mubr.bf16.mxu0 0
        %413 = vmatmul.mubr.bf16.gmra.mxu0 %v357
        %v414 = vpop.f32.mrf.mxu0
        %v415 = vadd.f32 %v347, %v414
        %v416 = vpop.f32.mrf.mxu0
        %v417 = vpop.f32.mrf.mxu0
        %v418 = vadd.f32 %v347, %v417
        %v419 = vpop.f32.mrf.mxu0
        %420 = vmatprep.mubr.bf16.mxu0 0
        %421 = vmatmul.mubr.bf16.gmra.mxu0 %v360
        %v422 = vpop.f32.mrf.mxu0
        %v423 = vadd.f32 %v347, %v422
        %v424 = vpop.f32.mrf.mxu0
        %v425 = vpop.f32.mrf.mxu0
        %v426 = vadd.f32 %v347, %v425
        %v427 = vpop.f32.mrf.mxu0
        %428 = vmatprep.mubr.bf16.mxu0 0
        %429 = vmatmul.mubr.bf16.gmra.mxu0 %v363
        %v430 = vpop.f32.mrf.mxu0
        %v431 = vadd.f32 %v347, %v430
        %v432 = vpop.f32.mrf.mxu0
        %v433 = vpop.f32.mrf.mxu0
        %v434 = vadd.f32 %v347, %v433
        %v435 = vpop.f32.mrf.mxu0
        %436 = vmatprep.mubr.bf16.mxu0 0
        %437 = vmatmul.mubr.bf16.gmra.mxu0 %v366
        %v438 = vpop.f32.mrf.mxu0
        %v439 = vadd.f32 %v347, %v438
        %v440 = vpop.f32.mrf.mxu0
        %v441 = vpop.f32.mrf.mxu0
        %v442 = vadd.f32 %v347, %v441
        %v443 = vpop.f32.mrf.mxu0
        %444 = vmatprep.mubr.bf16.mxu0 0
        %445 = vmatmul.mubr.bf16.gmra.mxu0 %v369
        %v446 = vpop.f32.mrf.mxu0
        %v447 = vadd.f32 %v347, %v446
        %v448 = vpop.f32.mrf.mxu0
        %v449 = vpop.f32.mrf.mxu0
        %v450 = vadd.f32 %v347, %v449
        %v451 = vpop.f32.mrf.mxu0
        %452 = vmatprep.mubr.bf16.mxu0 0
        %453 = vmatmul.mubr.bf16.gmra.mxu0 %v372
        %v454 = vpop.f32.mrf.mxu0
        %v455 = vadd.f32 %v347, %v454
        %v456 = vpop.f32.mrf.mxu0
        %v457 = vpop.f32.mrf.mxu0
        %v458 = vadd.f32 %v347, %v457
        %v459 = vpop.f32.mrf.mxu0
        %460 = vmatprep.mubr.bf16.mxu0 0
        %461 = vmatmul.mubr.bf16.gmra.mxu0 %v375
        %v462 = vpop.f32.mrf.mxu0
        %v463 = vadd.f32 %v347, %v462
        %v464 = vpop.f32.mrf.mxu0
        %v465 = vpop.f32.mrf.mxu0
        %v466 = vadd.f32 %v347, %v465
        %v467 = vpop.f32.mrf.mxu0
        %468 = vmatprep.mubr.bf16.mxu0 0
        %469 = vmatmul.mubr.bf16.gmra.mxu0 %v378
        %v470 = vpop.f32.mrf.mxu0
        %v471 = vadd.f32 %v347, %v470
        %v472 = vpop.f32.mrf.mxu0
        %v473 = vpop.f32.mrf.mxu0
        %v474 = vadd.f32 %v347, %v473
        %v475 = vpop.f32.mrf.mxu0
        %476 = vdwg.mxu0
        %v477 = vmax.f32 %v415, 0.0
        %v478 = vmax.f32 %v418, 0.0
        %v479 = vmax.f32 %v423, 0.0
        %v480 = vmax.f32 %v426, 0.0
        %v481 = vmax.f32 %v431, 0.0
        %v482 = vmax.f32 %v434, 0.0
        %v483 = vmax.f32 %v439, 0.0
        %v484 = vmax.f32 %v442, 0.0
        %v485 = vmax.f32 %v447, 0.0
        %v486 = vmax.f32 %v450, 0.0
        %v487 = vmax.f32 %v455, 0.0
        %v488 = vmax.f32 %v458, 0.0
        %v489 = vmax.f32 %v463, 0.0
        %v490 = vmax.f32 %v466, 0.0
        %v491 = vmax.f32 %v471, 0.0
        %v492 = vmax.f32 %v474, 0.0
        %s493 = ssub.s32 %s313, 1
        %p494 = scmp.gt.s32.totalorder %s493, 0
        %s495 = scalar_select %p494, %s493, 0
        %s496 = smul.u32 %s495, 16
        %s497 = scalar_lea.vmem %s280, %s496 [#allocation3]
        %v498 = vld [vmem:[%s497] sm:$0xff]
        %v499 = vld [vmem:[%s497 + $0x8] sm:$0xff]
        %s500 = sadd.s32 %s313, 8
        %p501 = scmp.lt.s32.totalorder %s500, 15
        %s502 = scalar_select %p501, %s500, 15
        %s503 = smul.u32 %s502, 16
        %s504 = scalar_lea.vmem %s280, %s503 [#allocation3]
        %v505 = vld [vmem:[%s504] sm:$0xff]
        %v506 = vld [vmem:[%s504 + $0x8] sm:$0xff]
        %v507 = vpack.c.bf16 %v499, %v498
        %v508 = vpack.c.bf16 %v506, %v505
        %v510 = vsel %vm355, %v507, 0
        %v513 = vsel %vm355, %v508, 0
        %515 = vmatprep.subr.bf16.mxu0 0
        %516 = vmatpush1.bf16.msra.mxu0 0
        %517 = vmatprep.subr.bf16.mxu0 0
        %518 = vmatpush1.bf16.msra.mxu0 0
        %519 = vmatprep.subr.bf16.mxu0 0
        %520 = vmatpush1.bf16.msra.mxu0 0
        %521 = vmatprep.subr.bf16.mxu0 0
        %522 = vmatpush1.bf16.msra.mxu0 0
        %523 = vmatprep.subr.bf16.mxu0 0
        %524 = vmatpush1.bf16.msra.mxu0 0
        %525 = vmatprep.subr.bf16.mxu0 0
        %526 = vmatpush1.bf16.msra.mxu0 0
        %527 = vmatprep.subr.bf16.mxu0 0
        %528 = vmatpush1.bf16.msra.mxu0 0
        %529 = vmatprep.subr.bf16.mxu0 0
        %530 = vmatpush1.bf16.msra.mxu0 %v353
        %531 = vmatprep.subr.bf16.mxu0 0
        %532 = vmatpush2.bf16.msra.mxu0 0
        %533 = vmatprep.subr.bf16.mxu0 0
        %534 = vmatpush2.bf16.msra.mxu0 0
        %535 = vmatprep.subr.bf16.mxu0 0
        %536 = vmatpush2.bf16.msra.mxu0 0
        %537 = vmatprep.subr.bf16.mxu0 0
        %538 = vmatpush2.bf16.msra.mxu0 0
        %539 = vmatprep.subr.bf16.mxu0 0
        %540 = vmatpush2.bf16.msra.mxu0 0
        %541 = vmatprep.subr.bf16.mxu0 0
        %542 = vmatpush2.bf16.msra.mxu0 0
        %543 = vmatprep.subr.bf16.mxu0 0
        %544 = vmatpush2.bf16.msra.mxu0 0
        %545 = vmatprep.subr.bf16.mxu0 0
        %546 = vmatpush2.bf16.msra.mxu0 0
        %547 = vmatprep.mubr.bf16.mxu0 0
        %548 = vmatmul.mubr.bf16.gmra.mxu0 %v510
        %v549 = vpop.f32.mrf.mxu0
        %v550 = vadd.f32 %v347, %v549
        %v551 = vpop.f32.mrf.mxu0
        %v552 = vpop.f32.mrf.mxu0
        %v553 = vadd.f32 %v347, %v552
        %v554 = vpop.f32.mrf.mxu0
        %555 = vmatprep.mubr.bf16.mxu0 0
        %556 = vmatmul.mubr.bf16.gmra.mxu0 %v513
        %v557 = vpop.f32.mrf.mxu0
        %v558 = vadd.f32 %v347, %v557
        %v559 = vpop.f32.mrf.mxu0
        %v560 = vpop.f32.mrf.mxu0
        %v561 = vadd.f32 %v347, %v560
        %v562 = vpop.f32.mrf.mxu0
        %563 = vdwg.mxu0
        %v564 = vmax.f32 %v550, 0.0
        %v565 = vmax.f32 %v553, 0.0
        %v566 = vmax.f32 %v558, 0.0
        %v567 = vmax.f32 %v561, 0.0
        %p568 = scmp.gt.s32.totalorder %s29, 0
        %s569 = scalar_select %p568, 1, 0
        %v570 = vstv %s569
        %vm571 = vcmp.eq.s32.totalorder %v570, 1
        %v572 = vsel %vm571, %v564, 0.0
        %v573 = vsel %vm571, %v565, 0.0
        %p574 = scmp.lt.s32.totalorder %s29, 1
        %s575 = scalar_select %p574, 1, 0
        %v576 = vstv %s575
        %vm577 = vcmp.eq.s32.totalorder %v576, 1
        %v578 = vsel %vm577, %v566, 0.0
        %v579 = vsel %vm577, %v567, 0.0
        %v580 = vpack.c.bf16 %v573, %v572
        %v581 = vpack.c.bf16 %v478, %v477
        %v582 = vpack.c.bf16 %v480, %v479
        %v583 = vpack.c.bf16 %v482, %v481
        %v584 = vpack.c.bf16 %v484, %v483
        %v585 = vpack.c.bf16 %v486, %v485
        %v586 = vpack.c.bf16 %v488, %v487
        %v587 = vpack.c.bf16 %v490, %v489
        %v588 = vpack.c.bf16 %v492, %v491
        %v589 = vpack.c.bf16 %v579, %v578
        %v591 = vshrl.u32 %v580, 16
        %v593 = vrot.slane %v591, 7
        %v594 = vshll.u32 %v580, 16
        %v596 = vor.u32 %v593, %v594
        %v598 = vshrl.u32 %v581, 16
        %v600 = vrot.slane %v598, 7
        %v601 = vshll.u32 %v581, 16
        %v603 = vor.u32 %v600, %v601
        %v605 = vshrl.u32 %v582, 16
        %v607 = vrot.slane %v605, 7
        %v608 = vshll.u32 %v582, 16
        %v610 = vor.u32 %v607, %v608
        %v612 = vshrl.u32 %v583, 16
        %v614 = vrot.slane %v612, 7
        %v615 = vshll.u32 %v583, 16
        %v617 = vor.u32 %v614, %v615
        %v619 = vshrl.u32 %v584, 16
        %v621 = vrot.slane %v619, 7
        %v622 = vshll.u32 %v584, 16
        %v624 = vor.u32 %v621, %v622
        %v626 = vshrl.u32 %v585, 16
        %v628 = vrot.slane %v626, 7
        %v629 = vshll.u32 %v585, 16
        %v631 = vor.u32 %v628, %v629
        %v633 = vshrl.u32 %v586, 16
        %v635 = vrot.slane %v633, 7
        %v636 = vshll.u32 %v586, 16
        %v638 = vor.u32 %v635, %v636
        %v640 = vshrl.u32 %v587, 16
        %v642 = vrot.slane %v640, 7
        %v643 = vshll.u32 %v587, 16
        %v645 = vor.u32 %v642, %v643
        %v647 = vshrl.u32 %v588, 16
        %v649 = vrot.slane %v647, 7
        %v650 = vshll.u32 %v588, 16
        %v652 = vor.u32 %v649, %v650
        %v654 = vshrl.u32 %v589, 16
        %v656 = vrot.slane %v654, 7
        %v657 = vshll.u32 %v589, 16
        %v659 = vor.u32 %v656, %v657
        %vm680 = vcmask 1040384
        %vm681 = vsmask.f32 256
        %vm682 = vmand %vm680, %vm681
        %v683 = vsel %vm682, 0, %v596
        %v684 = vsel %vm682, 0, %v603
        %v685 = vsel %vm682, 0, %v610
        %v686 = vsel %vm682, 0, %v617
        %v687 = vsel %vm682, 0, %v624
        %v688 = vsel %vm682, 0, %v631
        %v689 = vsel %vm682, 0, %v638
        %v690 = vsel %vm682, 0, %v645
        %v691 = vsel %vm682, 0, %v652
        %v692 = vsel %vm682, 0, %v659
        %v693 = vsel %vm682, %v593, 0
        %v694 = vsel %vm682, %v600, 0
        %v695 = vsel %vm682, %v607, 0
        %v696 = vsel %vm682, %v614, 0
        %v697 = vsel %vm682, %v621, 0
        %v698 = vsel %vm682, %v628, 0
        %v699 = vsel %vm682, %v635, 0
        %v700 = vsel %vm682, %v642, 0
        %v701 = vsel %vm682, %v649, 0
        %v702 = vsel %vm682, %v656, 0
        %v723 = vunpack.c.l.b16 %v683
        %v724 = vunpack.c.h.b16 %v683
        %v725 = vunpack.c.l.b16 %v693
        %v726 = vunpack.c.h.b16 %v693
        %v727 = vunpack.c.l.b16 %v684
        %v728 = vunpack.c.h.b16 %v684
        %v729 = vunpack.c.l.b16 %v694
        %v730 = vunpack.c.h.b16 %v694
        %v731 = vunpack.c.l.b16 %v685
        %v732 = vunpack.c.h.b16 %v685
        %v733 = vunpack.c.l.b16 %v695
        %v734 = vunpack.c.h.b16 %v695
        %v735 = vunpack.c.l.b16 %v686
        %v736 = vunpack.c.h.b16 %v686
        %v737 = vunpack.c.l.b16 %v696
        %v738 = vunpack.c.h.b16 %v696
        %v739 = vunpack.c.l.b16 %v687
        %v740 = vunpack.c.h.b16 %v687
        %v741 = vunpack.c.l.b16 %v697
        %v742 = vunpack.c.h.b16 %v697
        %v743 = vunpack.c.l.b16 %v688
        %v744 = vunpack.c.h.b16 %v688
        %v745 = vunpack.c.l.b16 %v698
        %v746 = vunpack.c.h.b16 %v698
        %v747 = vunpack.c.l.b16 %v689
        %v748 = vunpack.c.h.b16 %v689
        %v749 = vunpack.c.l.b16 %v699
        %v750 = vunpack.c.h.b16 %v699
        %v751 = vunpack.c.l.b16 %v690
        %v752 = vunpack.c.h.b16 %v690
        %v753 = vunpack.c.l.b16 %v700
        %v754 = vunpack.c.h.b16 %v700
        %v755 = vunpack.c.l.b16 %v691
        %v756 = vunpack.c.h.b16 %v691
        %v757 = vunpack.c.l.b16 %v701
        %v758 = vunpack.c.h.b16 %v701
        %v759 = vunpack.c.l.b16 %v692
        %v760 = vunpack.c.h.b16 %v692
        %v761 = vunpack.c.l.b16 %v702
        %v762 = vunpack.c.h.b16 %v702
        %v763 = vpack.c.b16 %v723, %v723
        %v764 = vpack.c.b16 %v724, %v724
        %v765 = vpack.c.b16 %v725, %v725
        %v766 = vpack.c.b16 %v726, %v726
        %v767 = vpack.c.b16 %v727, %v727
        %v768 = vpack.c.b16 %v728, %v728
        %v769 = vpack.c.b16 %v729, %v729
        %v770 = vpack.c.b16 %v730, %v730
        %v771 = vpack.c.b16 %v731, %v731
        %v772 = vpack.c.b16 %v732, %v732
        %v773 = vpack.c.b16 %v733, %v733
        %v774 = vpack.c.b16 %v734, %v734
        %v775 = vpack.c.b16 %v735, %v735
        %v776 = vpack.c.b16 %v736, %v736
        %v777 = vpack.c.b16 %v737, %v737
        %v778 = vpack.c.b16 %v738, %v738
        %v779 = vpack.c.b16 %v739, %v739
        %v780 = vpack.c.b16 %v740, %v740
        %v781 = vpack.c.b16 %v741, %v741
        %v782 = vpack.c.b16 %v742, %v742
        %v783 = vpack.c.b16 %v743, %v743
        %v784 = vpack.c.b16 %v744, %v744
        %v785 = vpack.c.b16 %v745, %v745
        %v786 = vpack.c.b16 %v746, %v746
        %v787 = vpack.c.b16 %v747, %v747
        %v788 = vpack.c.b16 %v748, %v748
        %v789 = vpack.c.b16 %v749, %v749
        %v790 = vpack.c.b16 %v750, %v750
        %v791 = vpack.c.b16 %v751, %v751
        %v792 = vpack.c.b16 %v752, %v752
        %v793 = vpack.c.b16 %v753, %v753
        %v794 = vpack.c.b16 %v754, %v754
        %v795 = vpack.c.b16 %v755, %v755
        %v796 = vpack.c.b16 %v756, %v756
        %v797 = vpack.c.b16 %v757, %v757
        %v798 = vpack.c.b16 %v758, %v758
        %v799 = vpack.c.b16 %v759, %v759
        %v800 = vpack.c.b16 %v760, %v760
        %v801 = vpack.c.b16 %v761, %v761
        %v802 = vpack.c.b16 %v762, %v762
        %vm843 = vcmask 27648
        %844 = vst.msk [vmem:[#allocation2] sm:$0xf] %vm843, %v763
        %845 = vst.msk [vmem:[#allocation2 + $0x4] sm:$0xf] %vm843, %v764
        %846 = vst.msk [vmem:[#allocation2 + $0x8] sm:$0xf] %vm843, %v765
        %847 = vst.msk [vmem:[#allocation2 + $0xc] sm:$0xf] %vm843, %v766
        %848 = vst.msk [vmem:[#allocation2 + $0x10] sm:$0xf] %vm843, %v767
        %849 = vst.msk [vmem:[#allocation2 + $0x14] sm:$0xf] %vm843, %v768
        %850 = vst.msk [vmem:[#allocation2 + $0x18] sm:$0xf] %vm843, %v769
        %851 = vst.msk [vmem:[#allocation2 + $0x1c] sm:$0xf] %vm843, %v770
        %852 = vst.msk [vmem:[#allocation2 + $0x20] sm:$0xf] %vm843, %v771
        %853 = vst.msk [vmem:[#allocation2 + $0x24] sm:$0xf] %vm843, %v772
        %854 = vst.msk [vmem:[#allocation2 + $0x28] sm:$0xf] %vm843, %v773
        %855 = vst.msk [vmem:[#allocation2 + $0x2c] sm:$0xf] %vm843, %v774
        %856 = vst.msk [vmem:[#allocation2 + $0x30] sm:$0xf] %vm843, %v775
        %857 = vst.msk [vmem:[#allocation2 + $0x34] sm:$0xf] %vm843, %v776
        %858 = vst.msk [vmem:[#allocation2 + $0x38] sm:$0xf] %vm843, %v777
        %859 = vst.msk [vmem:[#allocation2 + $0x3c] sm:$0xf] %vm843, %v778
        %860 = vst.msk [vmem:[#allocation2 + $0x40] sm:$0xf] %vm843, %v779
        %861 = vst.msk [vmem:[#allocation2 + $0x44] sm:$0xf] %vm843, %v780
        %862 = vst.msk [vmem:[#allocation2 + $0x48] sm:$0xf] %vm843, %v781
        %863 = vst.msk [vmem:[#allocation2 + $0x4c] sm:$0xf] %vm843, %v782
        %864 = vst.msk [vmem:[#allocation2 + $0x50] sm:$0xf] %vm843, %v783
        %865 = vst.msk [vmem:[#allocation2 + $0x54] sm:$0xf] %vm843, %v784
        %866 = vst.msk [vmem:[#allocation2 + $0x58] sm:$0xf] %vm843, %v785
        %867 = vst.msk [vmem:[#allocation2 + $0x5c] sm:$0xf] %vm843, %v786
        %868 = vst.msk [vmem:[#allocation2 + $0x60] sm:$0xf] %vm843, %v787
        %869 = vst.msk [vmem:[#allocation2 + $0x64] sm:$0xf] %vm843, %v788
        %870 = vst.msk [vmem:[#allocation2 + $0x68] sm:$0xf] %vm843, %v789
        %871 = vst.msk [vmem:[#allocation2 + $0x6c] sm:$0xf] %vm843, %v790
        %872 = vst.msk [vmem:[#allocation2 + $0x70] sm:$0xf] %vm843, %v791
        %873 = vst.msk [vmem:[#allocation2 + $0x74] sm:$0xf] %vm843, %v792
        %874 = vst.msk [vmem:[#allocation2 + $0x78] sm:$0xf] %vm843, %v793
        %875 = vst.msk [vmem:[#allocation2 + $0x7c] sm:$0xf] %vm843, %v794
        %876 = vst.msk [vmem:[#allocation2 + $0x80] sm:$0xf] %vm843, %v795
        %877 = vst.msk [vmem:[#allocation2 + $0x84] sm:$0xf] %vm843, %v796
        %878 = vst.msk [vmem:[#allocation2 + $0x88] sm:$0xf] %vm843, %v797
        %879 = vst.msk [vmem:[#allocation2 + $0x8c] sm:$0xf] %vm843, %v798
        %880 = vst.msk [vmem:[#allocation2 + $0x90] sm:$0xf] %vm843, %v799
        %881 = vst.msk [vmem:[#allocation2 + $0x94] sm:$0xf] %vm843, %v800
        %882 = vst.msk [vmem:[#allocation2 + $0x98] sm:$0xf] %vm843, %v801
        %883 = vst.msk [vmem:[#allocation2 + $0x9c] sm:$0xf] %vm843, %v802
        %v884 = vld [vmem:[#allocation2] sm:$0xf]
        %v885 = vld [vmem:[#allocation2 + $0x4] sm:$0xf]
        %v886 = vld [vmem:[#allocation2 + $0x10] sm:$0xf]
        %v887 = vld [vmem:[#allocation2 + $0x14] sm:$0xf]
        %v888 = vld [vmem:[#allocation2 + $0x20] sm:$0xf]
        %v889 = vld [vmem:[#allocation2 + $0x24] sm:$0xf]
        %v890 = vld [vmem:[#allocation2 + $0x30] sm:$0xf]
        %v891 = vld [vmem:[#allocation2 + $0x34] sm:$0xf]
        %v892 = vld [vmem:[#allocation2 + $0x40] sm:$0xf]
        %v893 = vld [vmem:[#allocation2 + $0x44] sm:$0xf]
        %v894 = vld [vmem:[#allocation2 + $0x50] sm:$0xf]
        %v895 = vld [vmem:[#allocation2 + $0x54] sm:$0xf]
        %v896 = vld [vmem:[#allocation2 + $0x60] sm:$0xf]
        %v897 = vld [vmem:[#allocation2 + $0x64] sm:$0xf]
        %v898 = vld [vmem:[#allocation2 + $0x70] sm:$0xf]
        %v899 = vld [vmem:[#allocation2 + $0x74] sm:$0xf]
        %v900 = vld [vmem:[#allocation2 + $0x8] sm:$0x1]
        %v901 = vld [vmem:[#allocation2 + $0x18] sm:$0x1]
        %v902 = vld [vmem:[#allocation2 + $0x28] sm:$0x1]
        %v903 = vld [vmem:[#allocation2 + $0x38] sm:$0x1]
        %v904 = vld [vmem:[#allocation2 + $0x48] sm:$0x1]
        %v905 = vld [vmem:[#allocation2 + $0x58] sm:$0x1]
        %v906 = vld [vmem:[#allocation2 + $0x68] sm:$0x1]
        %v907 = vld [vmem:[#allocation2 + $0x78] sm:$0x1]
        %vm908 = vsmask.f32 3328
        %vm909 = vsmask.f32 7440
        %vm910 = vmor %vm908, %vm909
        %v912 = vshrl.u32 %v884, 16
        %v914 = vrot.slane %v912, 4
        %v915 = vshll.u32 %v884, 16
        %v917 = vrot.slane %v915, 5
        %v918 = vor.u32 %v914, %v917
        %v919 = vrot.slane %v918, 4
        %v921 = vshll.u32 %v885, 16
        %v923 = vrot.slane %v921, 5
        %v924 = vsel %vm910, %v919, %v923
        %v925 = vshrl.u32 %v885, 16
        %v927 = vrot.slane %v925, 4
        %v928 = vor.u32 %v927, %v923
        %v929 = vrot.slane %v928, 4
        %v931 = vshll.u32 %v900, 16
        %v933 = vrot.slane %v931, 5
        %v934 = vsel %vm910, %v929, %v933
        %v936 = vshrl.u32 %v886, 16
        %v938 = vrot.slane %v936, 4
        %v939 = vshll.u32 %v886, 16
        %v941 = vrot.slane %v939, 5
        %v942 = vor.u32 %v938, %v941
        %v943 = vrot.slane %v942, 4
        %v945 = vshll.u32 %v887, 16
        %v947 = vrot.slane %v945, 5
        %v948 = vsel %vm910, %v943, %v947
        %v949 = vshrl.u32 %v887, 16
        %v951 = vrot.slane %v949, 4
        %v952 = vor.u32 %v951, %v947
        %v953 = vrot.slane %v952, 4
        %v955 = vshll.u32 %v901, 16
        %v957 = vrot.slane %v955, 5
        %v958 = vsel %vm910, %v953, %v957
        %v960 = vshrl.u32 %v888, 16
        %v962 = vrot.slane %v960, 4
        %v963 = vshll.u32 %v888, 16
        %v965 = vrot.slane %v963, 5
        %v966 = vor.u32 %v962, %v965
        %v967 = vrot.slane %v966, 4
        %v969 = vshll.u32 %v889, 16
        %v971 = vrot.slane %v969, 5
        %v972 = vsel %vm910, %v967, %v971
        %v973 = vshrl.u32 %v889, 16
        %v975 = vrot.slane %v973, 4
        %v976 = vor.u32 %v975, %v971
        %v977 = vrot.slane %v976, 4
        %v979 = vshll.u32 %v902, 16
        %v981 = vrot.slane %v979, 5
        %v982 = vsel %vm910, %v977, %v981
        %v984 = vshrl.u32 %v890, 16
        %v986 = vrot.slane %v984, 4
        %v987 = vshll.u32 %v890, 16
        %v989 = vrot.slane %v987, 5
        %v990 = vor.u32 %v986, %v989
        %v991 = vrot.slane %v990, 4
        %v993 = vshll.u32 %v891, 16
        %v995 = vrot.slane %v993, 5
        %v996 = vsel %vm910, %v991, %v995
        %v997 = vshrl.u32 %v891, 16
        %v999 = vrot.slane %v997, 4
        %v1000 = vor.u32 %v999, %v995
        %v1001 = vrot.slane %v1000, 4
        %v1003 = vshll.u32 %v903, 16
        %v1005 = vrot.slane %v1003, 5
        %v1006 = vsel %vm910, %v1001, %v1005
        %v1008 = vshrl.u32 %v892, 16
        %v1010 = vrot.slane %v1008, 4
        %v1011 = vshll.u32 %v892, 16
        %v1013 = vrot.slane %v1011, 5
        %v1014 = vor.u32 %v1010, %v1013
        %v1015 = vrot.slane %v1014, 4
        %v1017 = vshll.u32 %v893, 16
        %v1019 = vrot.slane %v1017, 5
        %v1020 = vsel %vm910, %v1015, %v1019
        %v1021 = vshrl.u32 %v893, 16
        %v1023 = vrot.slane %v1021, 4
        %v1024 = vor.u32 %v1023, %v1019
        %v1025 = vrot.slane %v1024, 4
        %v1027 = vshll.u32 %v904, 16
        %v1029 = vrot.slane %v1027, 5
        %v1030 = vsel %vm910, %v1025, %v1029
        %v1032 = vshrl.u32 %v894, 16
        %v1034 = vrot.slane %v1032, 4
        %v1035 = vshll.u32 %v894, 16
        %v1037 = vrot.slane %v1035, 5
        %v1038 = vor.u32 %v1034, %v1037
        %v1039 = vrot.slane %v1038, 4
        %v1041 = vshll.u32 %v895, 16
        %v1043 = vrot.slane %v1041, 5
        %v1044 = vsel %vm910, %v1039, %v1043
        %v1045 = vshrl.u32 %v895, 16
        %v1047 = vrot.slane %v1045, 4
        %v1048 = vor.u32 %v1047, %v1043
        %v1049 = vrot.slane %v1048, 4
        %v1051 = vshll.u32 %v905, 16
        %v1053 = vrot.slane %v1051, 5
        %v1054 = vsel %vm910, %v1049, %v1053
        %v1056 = vshrl.u32 %v896, 16
        %v1058 = vrot.slane %v1056, 4
        %v1059 = vshll.u32 %v896, 16
        %v1061 = vrot.slane %v1059, 5
        %v1062 = vor.u32 %v1058, %v1061
        %v1063 = vrot.slane %v1062, 4
        %v1065 = vshll.u32 %v897, 16
        %v1067 = vrot.slane %v1065, 5
        %v1068 = vsel %vm910, %v1063, %v1067
        %v1069 = vshrl.u32 %v897, 16
        %v1071 = vrot.slane %v1069, 4
        %v1072 = vor.u32 %v1071, %v1067
        %v1073 = vrot.slane %v1072, 4
        %v1075 = vshll.u32 %v906, 16
        %v1077 = vrot.slane %v1075, 5
        %v1078 = vsel %vm910, %v1073, %v1077
        %v1080 = vshrl.u32 %v898, 16
        %v1082 = vrot.slane %v1080, 4
        %v1083 = vshll.u32 %v898, 16
        %v1085 = vrot.slane %v1083, 5
        %v1086 = vor.u32 %v1082, %v1085
        %v1087 = vrot.slane %v1086, 4
        %v1089 = vshll.u32 %v899, 16
        %v1091 = vrot.slane %v1089, 5
        %v1092 = vsel %vm910, %v1087, %v1091
        %v1093 = vshrl.u32 %v899, 16
        %v1095 = vrot.slane %v1093, 4
        %v1096 = vor.u32 %v1095, %v1091
        %v1097 = vrot.slane %v1096, 4
        %v1099 = vshll.u32 %v907, 16
        %v1101 = vrot.slane %v1099, 5
        %v1102 = vsel %vm910, %v1097, %v1101
        %v1103 = vld [vmem:[#allocation2] sm:$0xe]
        %v1104 = vld [vmem:[#allocation2 + $0x10] sm:$0xe]
        %v1105 = vld [vmem:[#allocation2 + $0x20] sm:$0xe]
        %v1106 = vld [vmem:[#allocation2 + $0x30] sm:$0xe]
        %v1107 = vld [vmem:[#allocation2 + $0x40] sm:$0xe]
        %v1108 = vld [vmem:[#allocation2 + $0x50] sm:$0xe]
        %v1109 = vld [vmem:[#allocation2 + $0x60] sm:$0xe]
        %v1110 = vld [vmem:[#allocation2 + $0x70] sm:$0xe]
        %vm1135 = vcmask 1042432
        %vm1136 = vcmask 1046532
        %vm1137 = vmor %vm1135, %vm1136
        %v1138 = vrot.slane %v1103, 5
        %v1139 = vrot.slane %v1138, 4
        %v1140 = vrot.slane %v885, 5
        %v1141 = vsel %vm1137, %v1139, %v1140
        %v1142 = vrot.slane %v1140, 4
        %v1143 = vrot.slane %v900, 5
        %v1144 = vsel %vm1137, %v1142, %v1143
        %v1145 = vrot.slane %v1104, 5
        %v1146 = vrot.slane %v1145, 4
        %v1147 = vrot.slane %v887, 5
        %v1148 = vsel %vm1137, %v1146, %v1147
        %v1149 = vrot.slane %v1147, 4
        %v1150 = vrot.slane %v901, 5
        %v1151 = vsel %vm1137, %v1149, %v1150
        %v1152 = vrot.slane %v1105, 5
        %v1153 = vrot.slane %v1152, 4
        %v1154 = vrot.slane %v889, 5
        %v1155 = vsel %vm1137, %v1153, %v1154
        %v1156 = vrot.slane %v1154, 4
        %v1157 = vrot.slane %v902, 5
        %v1158 = vsel %vm1137, %v1156, %v1157
        %v1159 = vrot.slane %v1106, 5
        %v1160 = vrot.slane %v1159, 4
        %v1161 = vrot.slane %v891, 5
        %v1162 = vsel %vm1137, %v1160, %v1161
        %v1163 = vrot.slane %v1161, 4
        %v1164 = vrot.slane %v903, 5
        %v1165 = vsel %vm1137, %v1163, %v1164
        %v1166 = vrot.slane %v1107, 5
        %v1167 = vrot.slane %v1166, 4
        %v1168 = vrot.slane %v893, 5
        %v1169 = vsel %vm1137, %v1167, %v1168
        %v1170 = vrot.slane %v1168, 4
        %v1171 = vrot.slane %v904, 5
        %v1172 = vsel %vm1137, %v1170, %v1171
        %v1173 = vrot.slane %v1108, 5
        %v1174 = vrot.slane %v1173, 4
        %v1175 = vrot.slane %v895, 5
        %v1176 = vsel %vm1137, %v1174, %v1175
        %v1177 = vrot.slane %v1175, 4
        %v1178 = vrot.slane %v905, 5
        %v1179 = vsel %vm1137, %v1177, %v1178
        %v1180 = vrot.slane %v1109, 5
        %v1181 = vrot.slane %v1180, 4
        %v1182 = vrot.slane %v897, 5
        %v1183 = vsel %vm1137, %v1181, %v1182
        %v1184 = vrot.slane %v1182, 4
        %v1185 = vrot.slane %v906, 5
        %v1186 = vsel %vm1137, %v1184, %v1185
        %v1187 = vrot.slane %v1110, 5
        %v1188 = vrot.slane %v1187, 4
        %v1189 = vrot.slane %v899, 5
        %v1190 = vsel %vm1137, %v1188, %v1189
        %v1191 = vrot.slane %v1189, 4
        %v1192 = vrot.slane %v907, 5
        %v1193 = vsel %vm1137, %v1191, %v1192
        %s1194 = scalar_lea.vmem [#allocation2], 16
        %v1195 = vld [vmem:[%s1194] sm:$0xf]
        %v1196 = vld [vmem:[%s1194 + $0x4] sm:$0xf]
        %v1197 = vld [vmem:[%s1194 + $0x10] sm:$0xf]
        %v1198 = vld [vmem:[%s1194 + $0x14] sm:$0xf]
        %v1199 = vld [vmem:[%s1194 + $0x20] sm:$0xf]
        %v1200 = vld [vmem:[%s1194 + $0x24] sm:$0xf]
        %v1201 = vld [vmem:[%s1194 + $0x30] sm:$0xf]
        %v1202 = vld [vmem:[%s1194 + $0x34] sm:$0xf]
        %v1203 = vld [vmem:[%s1194 + $0x40] sm:$0xf]
        %v1204 = vld [vmem:[%s1194 + $0x44] sm:$0xf]
        %v1205 = vld [vmem:[%s1194 + $0x50] sm:$0xf]
        %v1206 = vld [vmem:[%s1194 + $0x54] sm:$0xf]
        %v1207 = vld [vmem:[%s1194 + $0x60] sm:$0xf]
        %v1208 = vld [vmem:[%s1194 + $0x64] sm:$0xf]
        %v1209 = vld [vmem:[%s1194 + $0x70] sm:$0xf]
        %v1210 = vld [vmem:[%s1194 + $0x74] sm:$0xf]
        %v1211 = vld [vmem:[%s1194 + $0x8] sm:$0x1]
        %v1212 = vld [vmem:[%s1194 + $0x18] sm:$0x1]
        %v1213 = vld [vmem:[%s1194 + $0x28] sm:$0x1]
        %v1214 = vld [vmem:[%s1194 + $0x38] sm:$0x1]
        %v1215 = vld [vmem:[%s1194 + $0x48] sm:$0x1]
        %v1216 = vld [vmem:[%s1194 + $0x58] sm:$0x1]
        %v1217 = vld [vmem:[%s1194 + $0x68] sm:$0x1]
        %v1218 = vld [vmem:[%s1194 + $0x78] sm:$0x1]
        %v1220 = vshrl.u32 %v1195, 16
        %v1222 = vrot.slane %v1220, 4
        %v1223 = vshll.u32 %v1195, 16
        %v1225 = vrot.slane %v1223, 5
        %v1226 = vor.u32 %v1222, %v1225
        %v1227 = vrot.slane %v1226, 4
        %v1229 = vshll.u32 %v1196, 16
        %v1231 = vrot.slane %v1229, 5
        %v1232 = vsel %vm910, %v1227, %v1231
        %v1233 = vshrl.u32 %v1196, 16
        %v1235 = vrot.slane %v1233, 4
        %v1236 = vor.u32 %v1235, %v1231
        %v1237 = vrot.slane %v1236, 4
        %v1239 = vshll.u32 %v1211, 16
        %v1241 = vrot.slane %v1239, 5
        %v1242 = vsel %vm910, %v1237, %v1241
        %v1244 = vshrl.u32 %v1197, 16
        %v1246 = vrot.slane %v1244, 4
        %v1247 = vshll.u32 %v1197, 16
        %v1249 = vrot.slane %v1247, 5
        %v1250 = vor.u32 %v1246, %v1249
        %v1251 = vrot.slane %v1250, 4
        %v1253 = vshll.u32 %v1198, 16
        %v1255 = vrot.slane %v1253, 5
        %v1256 = vsel %vm910, %v1251, %v1255
        %v1257 = vshrl.u32 %v1198, 16
        %v1259 = vrot.slane %v1257, 4
        %v1260 = vor.u32 %v1259, %v1255
        %v1261 = vrot.slane %v1260, 4
        %v1263 = vshll.u32 %v1212, 16
        %v1265 = vrot.slane %v1263, 5
        %v1266 = vsel %vm910, %v1261, %v1265
        %v1268 = vshrl.u32 %v1199, 16
        %v1270 = vrot.slane %v1268, 4
        %v1271 = vshll.u32 %v1199, 16
        %v1273 = vrot.slane %v1271, 5
        %v1274 = vor.u32 %v1270, %v1273
        %v1275 = vrot.slane %v1274, 4
        %v1277 = vshll.u32 %v1200, 16
        %v1279 = vrot.slane %v1277, 5
        %v1280 = vsel %vm910, %v1275, %v1279
        %v1281 = vshrl.u32 %v1200, 16
        %v1283 = vrot.slane %v1281, 4
        %v1284 = vor.u32 %v1283, %v1279
        %v1285 = vrot.slane %v1284, 4
        %v1287 = vshll.u32 %v1213, 16
        %v1289 = vrot.slane %v1287, 5
        %v1290 = vsel %vm910, %v1285, %v1289
        %v1292 = vshrl.u32 %v1201, 16
        %v1294 = vrot.slane %v1292, 4
        %v1295 = vshll.u32 %v1201, 16
        %v1297 = vrot.slane %v1295, 5
        %v1298 = vor.u32 %v1294, %v1297
        %v1299 = vrot.slane %v1298, 4
        %v1301 = vshll.u32 %v1202, 16
        %v1303 = vrot.slane %v1301, 5
        %v1304 = vsel %vm910, %v1299, %v1303
        %v1305 = vshrl.u32 %v1202, 16
        %v1307 = vrot.slane %v1305, 4
        %v1308 = vor.u32 %v1307, %v1303
        %v1309 = vrot.slane %v1308, 4
        %v1311 = vshll.u32 %v1214, 16
        %v1313 = vrot.slane %v1311, 5
        %v1314 = vsel %vm910, %v1309, %v1313
        %v1316 = vshrl.u32 %v1203, 16
        %v1318 = vrot.slane %v1316, 4
        %v1319 = vshll.u32 %v1203, 16
        %v1321 = vrot.slane %v1319, 5
        %v1322 = vor.u32 %v1318, %v1321
        %v1323 = vrot.slane %v1322, 4
        %v1325 = vshll.u32 %v1204, 16
        %v1327 = vrot.slane %v1325, 5
        %v1328 = vsel %vm910, %v1323, %v1327
        %v1329 = vshrl.u32 %v1204, 16
        %v1331 = vrot.slane %v1329, 4
        %v1332 = vor.u32 %v1331, %v1327
        %v1333 = vrot.slane %v1332, 4
        %v1335 = vshll.u32 %v1215, 16
        %v1337 = vrot.slane %v1335, 5
        %v1338 = vsel %vm910, %v1333, %v1337
        %v1340 = vshrl.u32 %v1205, 16
        %v1342 = vrot.slane %v1340, 4
        %v1343 = vshll.u32 %v1205, 16
        %v1345 = vrot.slane %v1343, 5
        %v1346 = vor.u32 %v1342, %v1345
        %v1347 = vrot.slane %v1346, 4
        %v1349 = vshll.u32 %v1206, 16
        %v1351 = vrot.slane %v1349, 5
        %v1352 = vsel %vm910, %v1347, %v1351
        %v1353 = vshrl.u32 %v1206, 16
        %v1355 = vrot.slane %v1353, 4
        %v1356 = vor.u32 %v1355, %v1351
        %v1357 = vrot.slane %v1356, 4
        %v1359 = vshll.u32 %v1216, 16
        %v1361 = vrot.slane %v1359, 5
        %v1362 = vsel %vm910, %v1357, %v1361
        %v1364 = vshrl.u32 %v1207, 16
        %v1366 = vrot.slane %v1364, 4
        %v1367 = vshll.u32 %v1207, 16
        %v1369 = vrot.slane %v1367, 5
        %v1370 = vor.u32 %v1366, %v1369
        %v1371 = vrot.slane %v1370, 4
        %v1373 = vshll.u32 %v1208, 16
        %v1375 = vrot.slane %v1373, 5
        %v1376 = vsel %vm910, %v1371, %v1375
        %v1377 = vshrl.u32 %v1208, 16
        %v1379 = vrot.slane %v1377, 4
        %v1380 = vor.u32 %v1379, %v1375
        %v1381 = vrot.slane %v1380, 4
        %v1383 = vshll.u32 %v1217, 16
        %v1385 = vrot.slane %v1383, 5
        %v1386 = vsel %vm910, %v1381, %v1385
        %v1388 = vshrl.u32 %v1209, 16
        %v1390 = vrot.slane %v1388, 4
        %v1391 = vshll.u32 %v1209, 16
        %v1393 = vrot.slane %v1391, 5
        %v1394 = vor.u32 %v1390, %v1393
        %v1395 = vrot.slane %v1394, 4
        %v1397 = vshll.u32 %v1210, 16
        %v1399 = vrot.slane %v1397, 5
        %v1400 = vsel %vm910, %v1395, %v1399
        %v1401 = vshrl.u32 %v1210, 16
        %v1403 = vrot.slane %v1401, 4
        %v1404 = vor.u32 %v1403, %v1399
        %v1405 = vrot.slane %v1404, 4
        %v1407 = vshll.u32 %v1218, 16
        %v1409 = vrot.slane %v1407, 5
        %v1410 = vsel %vm910, %v1405, %v1409
        %v1411 = vld [vmem:[%s1194] sm:$0xe]
        %v1412 = vld [vmem:[%s1194 + $0x10] sm:$0xe]
        %v1413 = vld [vmem:[%s1194 + $0x20] sm:$0xe]
        %v1414 = vld [vmem:[%s1194 + $0x30] sm:$0xe]
        %v1415 = vld [vmem:[%s1194 + $0x40] sm:$0xe]
        %v1416 = vld [vmem:[%s1194 + $0x50] sm:$0xe]
        %v1417 = vld [vmem:[%s1194 + $0x60] sm:$0xe]
        %v1418 = vld [vmem:[%s1194 + $0x70] sm:$0xe]
        %v1443 = vrot.slane %v1411, 5
        %v1444 = vrot.slane %v1443, 4
        %v1445 = vrot.slane %v1196, 5
        %v1446 = vsel %vm1137, %v1444, %v1445
        %v1447 = vrot.slane %v1445, 4
        %v1448 = vrot.slane %v1211, 5
        %v1449 = vsel %vm1137, %v1447, %v1448
        %v1450 = vrot.slane %v1412, 5
        %v1451 = vrot.slane %v1450, 4
        %v1452 = vrot.slane %v1198, 5
        %v1453 = vsel %vm1137, %v1451, %v1452
        %v1454 = vrot.slane %v1452, 4
        %v1455 = vrot.slane %v1212, 5
        %v1456 = vsel %vm1137, %v1454, %v1455
        %v1457 = vrot.slane %v1413, 5
        %v1458 = vrot.slane %v1457, 4
        %v1459 = vrot.slane %v1200, 5
        %v1460 = vsel %vm1137, %v1458, %v1459
        %v1461 = vrot.slane %v1459, 4
        %v1462 = vrot.slane %v1213, 5
        %v1463 = vsel %vm1137, %v1461, %v1462
        %v1464 = vrot.slane %v1414, 5
        %v1465 = vrot.slane %v1464, 4
        %v1466 = vrot.slane %v1202, 5
        %v1467 = vsel %vm1137, %v1465, %v1466
        %v1468 = vrot.slane %v1466, 4
        %v1469 = vrot.slane %v1214, 5
        %v1470 = vsel %vm1137, %v1468, %v1469
        %v1471 = vrot.slane %v1415, 5
        %v1472 = vrot.slane %v1471, 4
        %v1473 = vrot.slane %v1204, 5
        %v1474 = vsel %vm1137, %v1472, %v1473
        %v1475 = vrot.slane %v1473, 4
        %v1476 = vrot.slane %v1215, 5
        %v1477 = vsel %vm1137, %v1475, %v1476
        %v1478 = vrot.slane %v1416, 5
        %v1479 = vrot.slane %v1478, 4
        %v1480 = vrot.slane %v1206, 5
        %v1481 = vsel %vm1137, %v1479, %v1480
        %v1482 = vrot.slane %v1480, 4
        %v1483 = vrot.slane %v1216, 5
        %v1484 = vsel %vm1137, %v1482, %v1483
        %v1485 = vrot.slane %v1417, 5
        %v1486 = vrot.slane %v1485, 4
        %v1487 = vrot.slane %v1208, 5
        %v1488 = vsel %vm1137, %v1486, %v1487
        %v1489 = vrot.slane %v1487, 4
        %v1490 = vrot.slane %v1217, 5
        %v1491 = vsel %vm1137, %v1489, %v1490
        %v1492 = vrot.slane %v1418, 5
        %v1493 = vrot.slane %v1492, 4
        %v1494 = vrot.slane %v1210, 5
        %v1495 = vsel %vm1137, %v1493, %v1494
        %v1496 = vrot.slane %v1494, 4
        %v1497 = vrot.slane %v1218, 5
        %v1498 = vsel %vm1137, %v1496, %v1497
        %s1499 = scalar_lea.vmem [#allocation2], 32
        %v1500 = vld [vmem:[%s1499] sm:$0xf]
        %v1501 = vld [vmem:[%s1499 + $0x4] sm:$0xf]
        %v1502 = vld [vmem:[%s1499 + $0x10] sm:$0xf]
        %v1503 = vld [vmem:[%s1499 + $0x14] sm:$0xf]
        %v1504 = vld [vmem:[%s1499 + $0x20] sm:$0xf]
        %v1505 = vld [vmem:[%s1499 + $0x24] sm:$0xf]
        %v1506 = vld [vmem:[%s1499 + $0x30] sm:$0xf]
        %v1507 = vld [vmem:[%s1499 + $0x34] sm:$0xf]
        %v1508 = vld [vmem:[%s1499 + $0x40] sm:$0xf]
        %v1509 = vld [vmem:[%s1499 + $0x44] sm:$0xf]
        %v1510 = vld [vmem:[%s1499 + $0x50] sm:$0xf]
        %v1511 = vld [vmem:[%s1499 + $0x54] sm:$0xf]
        %v1512 = vld [vmem:[%s1499 + $0x60] sm:$0xf]
        %v1513 = vld [vmem:[%s1499 + $0x64] sm:$0xf]
        %v1514 = vld [vmem:[%s1499 + $0x70] sm:$0xf]
        %v1515 = vld [vmem:[%s1499 + $0x74] sm:$0xf]
        %v1516 = vld [vmem:[%s1499 + $0x8] sm:$0x1]
        %v1517 = vld [vmem:[%s1499 + $0x18] sm:$0x1]
        %v1518 = vld [vmem:[%s1499 + $0x28] sm:$0x1]
        %v1519 = vld [vmem:[%s1499 + $0x38] sm:$0x1]
        %v1520 = vld [vmem:[%s1499 + $0x48] sm:$0x1]
        %v1521 = vld [vmem:[%s1499 + $0x58] sm:$0x1]
        %v1522 = vld [vmem:[%s1499 + $0x68] sm:$0x1]
        %v1523 = vld [vmem:[%s1499 + $0x78] sm:$0x1]
        %v1525 = vshrl.u32 %v1500, 16
        %v1527 = vrot.slane %v1525, 4
        %v1528 = vshll.u32 %v1500, 16
        %v1530 = vrot.slane %v1528, 5
        %v1531 = vor.u32 %v1527, %v1530
        %v1532 = vrot.slane %v1531, 4
        %v1534 = vshll.u32 %v1501, 16
        %v1536 = vrot.slane %v1534, 5
        %v1537 = vsel %vm910, %v1532, %v1536
        %v1538 = vshrl.u32 %v1501, 16
        %v1540 = vrot.slane %v1538, 4
        %v1541 = vor.u32 %v1540, %v1536
        %v1542 = vrot.slane %v1541, 4
        %v1544 = vshll.u32 %v1516, 16
        %v1546 = vrot.slane %v1544, 5
        %v1547 = vsel %vm910, %v1542, %v1546
        %v1549 = vshrl.u32 %v1502, 16
        %v1551 = vrot.slane %v1549, 4
        %v1552 = vshll.u32 %v1502, 16
        %v1554 = vrot.slane %v1552, 5
        %v1555 = vor.u32 %v1551, %v1554
        %v1556 = vrot.slane %v1555, 4
        %v1558 = vshll.u32 %v1503, 16
        %v1560 = vrot.slane %v1558, 5
        %v1561 = vsel %vm910, %v1556, %v1560
        %v1562 = vshrl.u32 %v1503, 16
        %v1564 = vrot.slane %v1562, 4
        %v1565 = vor.u32 %v1564, %v1560
        %v1566 = vrot.slane %v1565, 4
        %v1568 = vshll.u32 %v1517, 16
        %v1570 = vrot.slane %v1568, 5
        %v1571 = vsel %vm910, %v1566, %v1570
        %v1573 = vshrl.u32 %v1504, 16
        %v1575 = vrot.slane %v1573, 4
        %v1576 = vshll.u32 %v1504, 16
        %v1578 = vrot.slane %v1576, 5
        %v1579 = vor.u32 %v1575, %v1578
        %v1580 = vrot.slane %v1579, 4
        %v1582 = vshll.u32 %v1505, 16
        %v1584 = vrot.slane %v1582, 5
        %v1585 = vsel %vm910, %v1580, %v1584
        %v1586 = vshrl.u32 %v1505, 16
        %v1588 = vrot.slane %v1586, 4
        %v1589 = vor.u32 %v1588, %v1584
        %v1590 = vrot.slane %v1589, 4
        %v1592 = vshll.u32 %v1518, 16
        %v1594 = vrot.slane %v1592, 5
        %v1595 = vsel %vm910, %v1590, %v1594
        %v1597 = vshrl.u32 %v1506, 16
        %v1599 = vrot.slane %v1597, 4
        %v1600 = vshll.u32 %v1506, 16
        %v1602 = vrot.slane %v1600, 5
        %v1603 = vor.u32 %v1599, %v1602
        %v1604 = vrot.slane %v1603, 4
        %v1606 = vshll.u32 %v1507, 16
        %v1608 = vrot.slane %v1606, 5
        %v1609 = vsel %vm910, %v1604, %v1608
        %v1610 = vshrl.u32 %v1507, 16
        %v1612 = vrot.slane %v1610, 4
        %v1613 = vor.u32 %v1612, %v1608
        %v1614 = vrot.slane %v1613, 4
        %v1616 = vshll.u32 %v1519, 16
        %v1618 = vrot.slane %v1616, 5
        %v1619 = vsel %vm910, %v1614, %v1618
        %v1621 = vshrl.u32 %v1508, 16
        %v1623 = vrot.slane %v1621, 4
        %v1624 = vshll.u32 %v1508, 16
        %v1626 = vrot.slane %v1624, 5
        %v1627 = vor.u32 %v1623, %v1626
        %v1628 = vrot.slane %v1627, 4
        %v1630 = vshll.u32 %v1509, 16
        %v1632 = vrot.slane %v1630, 5
        %v1633 = vsel %vm910, %v1628, %v1632
        %v1634 = vshrl.u32 %v1509, 16
        %v1636 = vrot.slane %v1634, 4
        %v1637 = vor.u32 %v1636, %v1632
        %v1638 = vrot.slane %v1637, 4
        %v1640 = vshll.u32 %v1520, 16
        %v1642 = vrot.slane %v1640, 5
        %v1643 = vsel %vm910, %v1638, %v1642
        %v1645 = vshrl.u32 %v1510, 16
        %v1647 = vrot.slane %v1645, 4
        %v1648 = vshll.u32 %v1510, 16
        %v1650 = vrot.slane %v1648, 5
        %v1651 = vor.u32 %v1647, %v1650
        %v1652 = vrot.slane %v1651, 4
        %v1654 = vshll.u32 %v1511, 16
        %v1656 = vrot.slane %v1654, 5
        %v1657 = vsel %vm910, %v1652, %v1656
        %v1658 = vshrl.u32 %v1511, 16
        %v1660 = vrot.slane %v1658, 4
        %v1661 = vor.u32 %v1660, %v1656
        %v1662 = vrot.slane %v1661, 4
        %v1664 = vshll.u32 %v1521, 16
        %v1666 = vrot.slane %v1664, 5
        %v1667 = vsel %vm910, %v1662, %v1666
        %v1669 = vshrl.u32 %v1512, 16
        %v1671 = vrot.slane %v1669, 4
        %v1672 = vshll.u32 %v1512, 16
        %v1674 = vrot.slane %v1672, 5
        %v1675 = vor.u32 %v1671, %v1674
        %v1676 = vrot.slane %v1675, 4
        %v1678 = vshll.u32 %v1513, 16
        %v1680 = vrot.slane %v1678, 5
        %v1681 = vsel %vm910, %v1676, %v1680
        %v1682 = vshrl.u32 %v1513, 16
        %v1684 = vrot.slane %v1682, 4
        %v1685 = vor.u32 %v1684, %v1680
        %v1686 = vrot.slane %v1685, 4
        %v1688 = vshll.u32 %v1522, 16
        %v1690 = vrot.slane %v1688, 5
        %v1691 = vsel %vm910, %v1686, %v1690
        %v1693 = vshrl.u32 %v1514, 16
        %v1695 = vrot.slane %v1693, 4
        %v1696 = vshll.u32 %v1514, 16
        %v1698 = vrot.slane %v1696, 5
        %v1699 = vor.u32 %v1695, %v1698
        %v1700 = vrot.slane %v1699, 4
        %v1702 = vshll.u32 %v1515, 16
        %v1704 = vrot.slane %v1702, 5
        %v1705 = vsel %vm910, %v1700, %v1704
        %v1706 = vshrl.u32 %v1515, 16
        %v1708 = vrot.slane %v1706, 4
        %v1709 = vor.u32 %v1708, %v1704
        %v1710 = vrot.slane %v1709, 4
        %v1712 = vshll.u32 %v1523, 16
        %v1714 = vrot.slane %v1712, 5
        %v1715 = vsel %vm910, %v1710, %v1714
        %v1716 = vld [vmem:[%s1499] sm:$0xe]
        %v1717 = vld [vmem:[%s1499 + $0x10] sm:$0xe]
        %v1718 = vld [vmem:[%s1499 + $0x20] sm:$0xe]
        %v1719 = vld [vmem:[%s1499 + $0x30] sm:$0xe]
        %v1720 = vld [vmem:[%s1499 + $0x40] sm:$0xe]
        %v1721 = vld [vmem:[%s1499 + $0x50] sm:$0xe]
        %v1722 = vld [vmem:[%s1499 + $0x60] sm:$0xe]
        %v1723 = vld [vmem:[%s1499 + $0x70] sm:$0xe]
        %v1748 = vrot.slane %v1716, 5
        %v1749 = vrot.slane %v1748, 4
        %v1750 = vrot.slane %v1501, 5
        %v1751 = vsel %vm1137, %v1749, %v1750
        %v1752 = vrot.slane %v1750, 4
        %v1753 = vrot.slane %v1516, 5
        %v1754 = vsel %vm1137, %v1752, %v1753
        %v1755 = vrot.slane %v1717, 5
        %v1756 = vrot.slane %v1755, 4
        %v1757 = vrot.slane %v1503, 5
        %v1758 = vsel %vm1137, %v1756, %v1757
        %v1759 = vrot.slane %v1757, 4
        %v1760 = vrot.slane %v1517, 5
        %v1761 = vsel %vm1137, %v1759, %v1760
        %v1762 = vrot.slane %v1718, 5
        %v1763 = vrot.slane %v1762, 4
        %v1764 = vrot.slane %v1505, 5
        %v1765 = vsel %vm1137, %v1763, %v1764
        %v1766 = vrot.slane %v1764, 4
        %v1767 = vrot.slane %v1518, 5
        %v1768 = vsel %vm1137, %v1766, %v1767
        %v1769 = vrot.slane %v1719, 5
        %v1770 = vrot.slane %v1769, 4
        %v1771 = vrot.slane %v1507, 5
        %v1772 = vsel %vm1137, %v1770, %v1771
        %v1773 = vrot.slane %v1771, 4
        %v1774 = vrot.slane %v1519, 5
        %v1775 = vsel %vm1137, %v1773, %v1774
        %v1776 = vrot.slane %v1720, 5
        %v1777 = vrot.slane %v1776, 4
        %v1778 = vrot.slane %v1509, 5
        %v1779 = vsel %vm1137, %v1777, %v1778
        %v1780 = vrot.slane %v1778, 4
        %v1781 = vrot.slane %v1520, 5
        %v1782 = vsel %vm1137, %v1780, %v1781
        %v1783 = vrot.slane %v1721, 5
        %v1784 = vrot.slane %v1783, 4
        %v1785 = vrot.slane %v1511, 5
        %v1786 = vsel %vm1137, %v1784, %v1785
        %v1787 = vrot.slane %v1785, 4
        %v1788 = vrot.slane %v1521, 5
        %v1789 = vsel %vm1137, %v1787, %v1788
        %v1790 = vrot.slane %v1722, 5
        %v1791 = vrot.slane %v1790, 4
        %v1792 = vrot.slane %v1513, 5
        %v1793 = vsel %vm1137, %v1791, %v1792
        %v1794 = vrot.slane %v1792, 4
        %v1795 = vrot.slane %v1522, 5
        %v1796 = vsel %vm1137, %v1794, %v1795
        %v1797 = vrot.slane %v1723, 5
        %v1798 = vrot.slane %v1797, 4
        %v1799 = vrot.slane %v1515, 5
        %v1800 = vsel %vm1137, %v1798, %v1799
        %v1801 = vrot.slane %v1799, 4
        %v1802 = vrot.slane %v1523, 5
        %v1803 = vsel %vm1137, %v1801, %v1802
        %v1812 = vunpack.c.l.b16 %v884
        %v1813 = vunpack.c.l.b16 %v885
        %v1814 = vunpack.c.l.b16 %v886
        %v1815 = vunpack.c.l.b16 %v887
        %v1816 = vunpack.c.l.b16 %v888
        %v1817 = vunpack.c.l.b16 %v889
        %v1818 = vunpack.c.l.b16 %v890
        %v1819 = vunpack.c.l.b16 %v891
        %v1820 = vunpack.c.l.b16 %v892
        %v1821 = vunpack.c.l.b16 %v893
        %v1822 = vunpack.c.l.b16 %v894
        %v1823 = vunpack.c.l.b16 %v895
        %v1824 = vunpack.c.l.b16 %v896
        %v1825 = vunpack.c.l.b16 %v897
        %v1826 = vunpack.c.l.b16 %v898
        %v1827 = vunpack.c.l.b16 %v899
        %v1828 = vpack.c.b16 %v1813, %v1812
        %v1829 = vpack.c.b16 %v1815, %v1814
        %v1830 = vpack.c.b16 %v1817, %v1816
        %v1831 = vpack.c.b16 %v1819, %v1818
        %v1832 = vpack.c.b16 %v1821, %v1820
        %v1833 = vpack.c.b16 %v1823, %v1822
        %v1834 = vpack.c.b16 %v1825, %v1824
        %v1835 = vpack.c.b16 %v1827, %v1826
        %v1836 = vunpack.c.l.b16 %v924
        %v1837 = vunpack.c.l.b16 %v934
        %v1838 = vunpack.c.l.b16 %v948
        %v1839 = vunpack.c.l.b16 %v958
        %v1840 = vunpack.c.l.b16 %v972
        %v1841 = vunpack.c.l.b16 %v982
        %v1842 = vunpack.c.l.b16 %v996
        %v1843 = vunpack.c.l.b16 %v1006
        %v1844 = vunpack.c.l.b16 %v1020
        %v1845 = vunpack.c.l.b16 %v1030
        %v1846 = vunpack.c.l.b16 %v1044
        %v1847 = vunpack.c.l.b16 %v1054
        %v1848 = vunpack.c.l.b16 %v1068
        %v1849 = vunpack.c.l.b16 %v1078
        %v1850 = vunpack.c.l.b16 %v1092
        %v1851 = vunpack.c.l.b16 %v1102
        %v1852 = vpack.c.b16 %v1837, %v1836
        %v1853 = vpack.c.b16 %v1839, %v1838
        %v1854 = vpack.c.b16 %v1841, %v1840
        %v1855 = vpack.c.b16 %v1843, %v1842
        %v1856 = vpack.c.b16 %v1845, %v1844
        %v1857 = vpack.c.b16 %v1847, %v1846
        %v1858 = vpack.c.b16 %v1849, %v1848
        %v1859 = vpack.c.b16 %v1851, %v1850
        %1860 = vrot.lane.b32.xlu0 %v1852, 4
        %v1861 = vpop.permute.xlu0 %1860
        %1862 = vrot.lane.b32.xlu0 %v1853, 4
        %v1863 = vpop.permute.xlu0 %1862
        %1864 = vrot.lane.b32.xlu0 %v1854, 4
        %v1865 = vpop.permute.xlu0 %1864
        %1866 = vrot.lane.b32.xlu0 %v1855, 4
        %v1867 = vpop.permute.xlu0 %1866
        %1868 = vrot.lane.b32.xlu0 %v1856, 4
        %v1869 = vpop.permute.xlu0 %1868
        %1870 = vrot.lane.b32.xlu0 %v1857, 4
        %v1871 = vpop.permute.xlu0 %1870
        %1872 = vrot.lane.b32.xlu0 %v1858, 4
        %v1873 = vpop.permute.xlu0 %1872
        %1874 = vrot.lane.b32.xlu0 %v1859, 4
        %v1875 = vpop.permute.xlu0 %1874
        %v1876 = vunpack.c.l.b16 %v1141
        %v1877 = vunpack.c.l.b16 %v1144
        %v1878 = vunpack.c.l.b16 %v1148
        %v1879 = vunpack.c.l.b16 %v1151
        %v1880 = vunpack.c.l.b16 %v1155
        %v1881 = vunpack.c.l.b16 %v1158
        %v1882 = vunpack.c.l.b16 %v1162
        %v1883 = vunpack.c.l.b16 %v1165
        %v1884 = vunpack.c.l.b16 %v1169
        %v1885 = vunpack.c.l.b16 %v1172
        %v1886 = vunpack.c.l.b16 %v1176
        %v1887 = vunpack.c.l.b16 %v1179
        %v1888 = vunpack.c.l.b16 %v1183
        %v1889 = vunpack.c.l.b16 %v1186
        %v1890 = vunpack.c.l.b16 %v1190
        %v1891 = vunpack.c.l.b16 %v1193
        %v1892 = vpack.c.b16 %v1877, %v1876
        %v1893 = vpack.c.b16 %v1879, %v1878
        %v1894 = vpack.c.b16 %v1881, %v1880
        %v1895 = vpack.c.b16 %v1883, %v1882
        %v1896 = vpack.c.b16 %v1885, %v1884
        %v1897 = vpack.c.b16 %v1887, %v1886
        %v1898 = vpack.c.b16 %v1889, %v1888
        %v1899 = vpack.c.b16 %v1891, %v1890
        %1900 = vrot.lane.b32.xlu0 %v1892, 8
        %v1901 = vpop.permute.xlu0 %1900
        %1902 = vrot.lane.b32.xlu0 %v1893, 8
        %v1903 = vpop.permute.xlu0 %1902
        %1904 = vrot.lane.b32.xlu0 %v1894, 8
        %v1905 = vpop.permute.xlu0 %1904
        %1906 = vrot.lane.b32.xlu0 %v1895, 8
        %v1907 = vpop.permute.xlu0 %1906
        %1908 = vrot.lane.b32.xlu0 %v1896, 8
        %v1909 = vpop.permute.xlu0 %1908
        %1910 = vrot.lane.b32.xlu0 %v1897, 8
        %v1911 = vpop.permute.xlu0 %1910
        %1912 = vrot.lane.b32.xlu0 %v1898, 8
        %v1913 = vpop.permute.xlu0 %1912
        %1914 = vrot.lane.b32.xlu0 %v1899, 8
        %v1915 = vpop.permute.xlu0 %1914
        %v1924 = vunpack.c.l.b16 %v1195
        %v1925 = vunpack.c.l.b16 %v1196
        %v1926 = vunpack.c.l.b16 %v1197
        %v1927 = vunpack.c.l.b16 %v1198
        %v1928 = vunpack.c.l.b16 %v1199
        %v1929 = vunpack.c.l.b16 %v1200
        %v1930 = vunpack.c.l.b16 %v1201
        %v1931 = vunpack.c.l.b16 %v1202
        %v1932 = vunpack.c.l.b16 %v1203
        %v1933 = vunpack.c.l.b16 %v1204
        %v1934 = vunpack.c.l.b16 %v1205
        %v1935 = vunpack.c.l.b16 %v1206
        %v1936 = vunpack.c.l.b16 %v1207
        %v1937 = vunpack.c.l.b16 %v1208
        %v1938 = vunpack.c.l.b16 %v1209
        %v1939 = vunpack.c.l.b16 %v1210
        %v1940 = vpack.c.b16 %v1925, %v1924
        %v1941 = vpack.c.b16 %v1927, %v1926
        %v1942 = vpack.c.b16 %v1929, %v1928
        %v1943 = vpack.c.b16 %v1931, %v1930
        %v1944 = vpack.c.b16 %v1933, %v1932
        %v1945 = vpack.c.b16 %v1935, %v1934
        %v1946 = vpack.c.b16 %v1937, %v1936
        %v1947 = vpack.c.b16 %v1939, %v1938
        %1948 = vrot.lane.b32.xlu0 %v1940, 12
        %v1949 = vpop.permute.xlu0 %1948
        %1950 = vrot.lane.b32.xlu0 %v1941, 12
        %v1951 = vpop.permute.xlu0 %1950
        %1952 = vrot.lane.b32.xlu0 %v1942, 12
        %v1953 = vpop.permute.xlu0 %1952
        %1954 = vrot.lane.b32.xlu0 %v1943, 12
        %v1955 = vpop.permute.xlu0 %1954
        %1956 = vrot.lane.b32.xlu0 %v1944, 12
        %v1957 = vpop.permute.xlu0 %1956
        %1958 = vrot.lane.b32.xlu0 %v1945, 12
        %v1959 = vpop.permute.xlu0 %1958
        %1960 = vrot.lane.b32.xlu0 %v1946, 12
        %v1961 = vpop.permute.xlu0 %1960
        %1962 = vrot.lane.b32.xlu0 %v1947, 12
        %v1963 = vpop.permute.xlu0 %1962
        %v1964 = vunpack.c.l.b16 %v1232
        %v1965 = vunpack.c.l.b16 %v1242
        %v1966 = vunpack.c.l.b16 %v1256
        %v1967 = vunpack.c.l.b16 %v1266
        %v1968 = vunpack.c.l.b16 %v1280
        %v1969 = vunpack.c.l.b16 %v1290
        %v1970 = vunpack.c.l.b16 %v1304
        %v1971 = vunpack.c.l.b16 %v1314
        %v1972 = vunpack.c.l.b16 %v1328
        %v1973 = vunpack.c.l.b16 %v1338
        %v1974 = vunpack.c.l.b16 %v1352
        %v1975 = vunpack.c.l.b16 %v1362
        %v1976 = vunpack.c.l.b16 %v1376
        %v1977 = vunpack.c.l.b16 %v1386
        %v1978 = vunpack.c.l.b16 %v1400
        %v1979 = vunpack.c.l.b16 %v1410
        %v1980 = vpack.c.b16 %v1965, %v1964
        %v1981 = vpack.c.b16 %v1967, %v1966
        %v1982 = vpack.c.b16 %v1969, %v1968
        %v1983 = vpack.c.b16 %v1971, %v1970
        %v1984 = vpack.c.b16 %v1973, %v1972
        %v1985 = vpack.c.b16 %v1975, %v1974
        %v1986 = vpack.c.b16 %v1977, %v1976
        %v1987 = vpack.c.b16 %v1979, %v1978
        %1988 = vrot.lane.b32.xlu0 %v1980, 16
        %v1989 = vpop.permute.xlu0 %1988
        %1990 = vrot.lane.b32.xlu0 %v1981, 16
        %v1991 = vpop.permute.xlu0 %1990
        %1992 = vrot.lane.b32.xlu0 %v1982, 16
        %v1993 = vpop.permute.xlu0 %1992
        %1994 = vrot.lane.b32.xlu0 %v1983, 16
        %v1995 = vpop.permute.xlu0 %1994
        %1996 = vrot.lane.b32.xlu0 %v1984, 16
        %v1997 = vpop.permute.xlu0 %1996
        %1998 = vrot.lane.b32.xlu0 %v1985, 16
        %v1999 = vpop.permute.xlu0 %1998
        %2000 = vrot.lane.b32.xlu0 %v1986, 16
        %v2001 = vpop.permute.xlu0 %2000
        %2002 = vrot.lane.b32.xlu0 %v1987, 16
        %v2003 = vpop.permute.xlu0 %2002
        %v2004 = vunpack.c.l.b16 %v1446
        %v2005 = vunpack.c.l.b16 %v1449
        %v2006 = vunpack.c.l.b16 %v1453
        %v2007 = vunpack.c.l.b16 %v1456
        %v2008 = vunpack.c.l.b16 %v1460
        %v2009 = vunpack.c.l.b16 %v1463
        %v2010 = vunpack.c.l.b16 %v1467
        %v2011 = vunpack.c.l.b16 %v1470
        %v2012 = vunpack.c.l.b16 %v1474
        %v2013 = vunpack.c.l.b16 %v1477
        %v2014 = vunpack.c.l.b16 %v1481
        %v2015 = vunpack.c.l.b16 %v1484
        %v2016 = vunpack.c.l.b16 %v1488
        %v2017 = vunpack.c.l.b16 %v1491
        %v2018 = vunpack.c.l.b16 %v1495
        %v2019 = vunpack.c.l.b16 %v1498
        %v2020 = vpack.c.b16 %v2005, %v2004
        %v2021 = vpack.c.b16 %v2007, %v2006
        %v2022 = vpack.c.b16 %v2009, %v2008
        %v2023 = vpack.c.b16 %v2011, %v2010
        %v2024 = vpack.c.b16 %v2013, %v2012
        %v2025 = vpack.c.b16 %v2015, %v2014
        %v2026 = vpack.c.b16 %v2017, %v2016
        %v2027 = vpack.c.b16 %v2019, %v2018
        %2028 = vrot.lane.b32.xlu0 %v2020, 20
        %v2029 = vpop.permute.xlu0 %2028
        %2030 = vrot.lane.b32.xlu0 %v2021, 20
        %v2031 = vpop.permute.xlu0 %2030
        %2032 = vrot.lane.b32.xlu0 %v2022, 20
        %v2033 = vpop.permute.xlu0 %2032
        %2034 = vrot.lane.b32.xlu0 %v2023, 20
        %v2035 = vpop.permute.xlu0 %2034
        %2036 = vrot.lane.b32.xlu0 %v2024, 20
        %v2037 = vpop.permute.xlu0 %2036
        %2038 = vrot.lane.b32.xlu0 %v2025, 20
        %v2039 = vpop.permute.xlu0 %2038
        %2040 = vrot.lane.b32.xlu0 %v2026, 20
        %v2041 = vpop.permute.xlu0 %2040
        %2042 = vrot.lane.b32.xlu0 %v2027, 20
        %v2043 = vpop.permute.xlu0 %2042
        %v2052 = vunpack.c.l.b16 %v1500
        %v2053 = vunpack.c.l.b16 %v1501
        %v2054 = vunpack.c.l.b16 %v1502
        %v2055 = vunpack.c.l.b16 %v1503
        %v2056 = vunpack.c.l.b16 %v1504
        %v2057 = vunpack.c.l.b16 %v1505
        %v2058 = vunpack.c.l.b16 %v1506
        %v2059 = vunpack.c.l.b16 %v1507
        %v2060 = vunpack.c.l.b16 %v1508
        %v2061 = vunpack.c.l.b16 %v1509
        %v2062 = vunpack.c.l.b16 %v1510
        %v2063 = vunpack.c.l.b16 %v1511
        %v2064 = vunpack.c.l.b16 %v1512
        %v2065 = vunpack.c.l.b16 %v1513
        %v2066 = vunpack.c.l.b16 %v1514
        %v2067 = vunpack.c.l.b16 %v1515
        %v2068 = vpack.c.b16 %v2053, %v2052
        %v2069 = vpack.c.b16 %v2055, %v2054
        %v2070 = vpack.c.b16 %v2057, %v2056
        %v2071 = vpack.c.b16 %v2059, %v2058
        %v2072 = vpack.c.b16 %v2061, %v2060
        %v2073 = vpack.c.b16 %v2063, %v2062
        %v2074 = vpack.c.b16 %v2065, %v2064
        %v2075 = vpack.c.b16 %v2067, %v2066
        %2076 = vrot.lane.b32.xlu0 %v2068, 24
        %v2077 = vpop.permute.xlu0 %2076
        %2078 = vrot.lane.b32.xlu0 %v2069, 24
        %v2079 = vpop.permute.xlu0 %2078
        %2080 = vrot.lane.b32.xlu0 %v2070, 24
        %v2081 = vpop.permute.xlu0 %2080
        %2082 = vrot.lane.b32.xlu0 %v2071, 24
        %v2083 = vpop.permute.xlu0 %2082
        %2084 = vrot.lane.b32.xlu0 %v2072, 24
        %v2085 = vpop.permute.xlu0 %2084
        %2086 = vrot.lane.b32.xlu0 %v2073, 24
        %v2087 = vpop.permute.xlu0 %2086
        %2088 = vrot.lane.b32.xlu0 %v2074, 24
        %v2089 = vpop.permute.xlu0 %2088
        %2090 = vrot.lane.b32.xlu0 %v2075, 24
        %v2091 = vpop.permute.xlu0 %2090
        %v2092 = vunpack.c.l.b16 %v1537
        %v2093 = vunpack.c.l.b16 %v1547
        %v2094 = vunpack.c.l.b16 %v1561
        %v2095 = vunpack.c.l.b16 %v1571
        %v2096 = vunpack.c.l.b16 %v1585
        %v2097 = vunpack.c.l.b16 %v1595
        %v2098 = vunpack.c.l.b16 %v1609
        %v2099 = vunpack.c.l.b16 %v1619
        %v2100 = vunpack.c.l.b16 %v1633
        %v2101 = vunpack.c.l.b16 %v1643
        %v2102 = vunpack.c.l.b16 %v1657
        %v2103 = vunpack.c.l.b16 %v1667
        %v2104 = vunpack.c.l.b16 %v1681
        %v2105 = vunpack.c.l.b16 %v1691
        %v2106 = vunpack.c.l.b16 %v1705
        %v2107 = vunpack.c.l.b16 %v1715
        %v2108 = vpack.c.b16 %v2093, %v2092
        %v2109 = vpack.c.b16 %v2095, %v2094
        %v2110 = vpack.c.b16 %v2097, %v2096
        %v2111 = vpack.c.b16 %v2099, %v2098
        %v2112 = vpack.c.b16 %v2101, %v2100
        %v2113 = vpack.c.b16 %v2103, %v2102
        %v2114 = vpack.c.b16 %v2105, %v2104
        %v2115 = vpack.c.b16 %v2107, %v2106
        %2116 = vrot.lane.b32.xlu0 %v2108, 28
        %v2117 = vpop.permute.xlu0 %2116
        %2118 = vrot.lane.b32.xlu0 %v2109, 28
        %v2119 = vpop.permute.xlu0 %2118
        %2120 = vrot.lane.b32.xlu0 %v2110, 28
        %v2121 = vpop.permute.xlu0 %2120
        %2122 = vrot.lane.b32.xlu0 %v2111, 28
        %v2123 = vpop.permute.xlu0 %2122
        %2124 = vrot.lane.b32.xlu0 %v2112, 28
        %v2125 = vpop.permute.xlu0 %2124
        %2126 = vrot.lane.b32.xlu0 %v2113, 28
        %v2127 = vpop.permute.xlu0 %2126
        %2128 = vrot.lane.b32.xlu0 %v2114, 28
        %v2129 = vpop.permute.xlu0 %2128
        %2130 = vrot.lane.b32.xlu0 %v2115, 28
        %v2131 = vpop.permute.xlu0 %2130
        %v2132 = vunpack.c.l.b16 %v1751
        %v2133 = vunpack.c.l.b16 %v1754
        %v2134 = vunpack.c.l.b16 %v1758
        %v2135 = vunpack.c.l.b16 %v1761
        %v2136 = vunpack.c.l.b16 %v1765
        %v2137 = vunpack.c.l.b16 %v1768
        %v2138 = vunpack.c.l.b16 %v1772
        %v2139 = vunpack.c.l.b16 %v1775
        %v2140 = vunpack.c.l.b16 %v1779
        %v2141 = vunpack.c.l.b16 %v1782
        %v2142 = vunpack.c.l.b16 %v1786
        %v2143 = vunpack.c.l.b16 %v1789
        %v2144 = vunpack.c.l.b16 %v1793
        %v2145 = vunpack.c.l.b16 %v1796
        %v2146 = vunpack.c.l.b16 %v1800
        %v2147 = vunpack.c.l.b16 %v1803
        %v2148 = vpack.c.b16 %v2133, %v2132
        %v2149 = vpack.c.b16 %v2135, %v2134
        %v2150 = vpack.c.b16 %v2137, %v2136
        %v2151 = vpack.c.b16 %v2139, %v2138
        %v2152 = vpack.c.b16 %v2141, %v2140
        %v2153 = vpack.c.b16 %v2143, %v2142
        %v2154 = vpack.c.b16 %v2145, %v2144
        %v2155 = vpack.c.b16 %v2147, %v2146
        %2156 = vrot.lane.b32.xlu0 %v2148, 32
        %v2157 = vpop.permute.xlu0 %2156
        %2158 = vrot.lane.b32.xlu0 %v2149, 32
        %v2159 = vpop.permute.xlu0 %2158
        %2160 = vrot.lane.b32.xlu0 %v2150, 32
        %v2161 = vpop.permute.xlu0 %2160
        %2162 = vrot.lane.b32.xlu0 %v2151, 32
        %v2163 = vpop.permute.xlu0 %2162
        %2164 = vrot.lane.b32.xlu0 %v2152, 32
        %v2165 = vpop.permute.xlu0 %2164
        %2166 = vrot.lane.b32.xlu0 %v2153, 32
        %v2167 = vpop.permute.xlu0 %2166
        %2168 = vrot.lane.b32.xlu0 %v2154, 32
        %v2169 = vpop.permute.xlu0 %2168
        %2170 = vrot.lane.b32.xlu0 %v2155, 32
        %v2171 = vpop.permute.xlu0 %2170
        %vm2172 = vcmask 31744
        %v2175 = vsel %vm2172, %v1828, %v1861
        %v2178 = vsel %vm2172, %v1829, %v1863
        %v2181 = vsel %vm2172, %v1830, %v1865
        %v2184 = vsel %vm2172, %v1831, %v1867
        %v2187 = vsel %vm2172, %v1832, %v1869
        %v2190 = vsel %vm2172, %v1833, %v1871
        %v2193 = vsel %vm2172, %v1834, %v1873
        %v2196 = vsel %vm2172, %v1835, %v1875
        %vm2197 = vcmask 64512
        %v2199 = vsel %vm2197, %v2175, %v1901
        %v2201 = vsel %vm2197, %v2178, %v1903
        %v2203 = vsel %vm2197, %v2181, %v1905
        %v2205 = vsel %vm2197, %v2184, %v1907
        %v2207 = vsel %vm2197, %v2187, %v1909
        %v2209 = vsel %vm2197, %v2190, %v1911
        %v2211 = vsel %vm2197, %v2193, %v1913
        %v2213 = vsel %vm2197, %v2196, %v1915
        %vm2214 = vcmask 97280
        %v2216 = vsel %vm2214, %v2199, %v1949
        %v2218 = vsel %vm2214, %v2201, %v1951
        %v2220 = vsel %vm2214, %v2203, %v1953
        %v2222 = vsel %vm2214, %v2205, %v1955
        %v2224 = vsel %vm2214, %v2207, %v1957
        %v2226 = vsel %vm2214, %v2209, %v1959
        %v2228 = vsel %vm2214, %v2211, %v1961
        %v2230 = vsel %vm2214, %v2213, %v1963
        %v2232 = vsel %vm355, %v2216, %v1989
        %v2234 = vsel %vm355, %v2218, %v1991
        %v2236 = vsel %vm355, %v2220, %v1993
        %v2238 = vsel %vm355, %v2222, %v1995
        %v2240 = vsel %vm355, %v2224, %v1997
        %v2242 = vsel %vm355, %v2226, %v1999
        %v2244 = vsel %vm355, %v2228, %v2001
        %v2246 = vsel %vm355, %v2230, %v2003
        %vm2247 = vcmask 162816
        %v2249 = vsel %vm2247, %v2232, %v2029
        %v2251 = vsel %vm2247, %v2234, %v2031
        %v2253 = vsel %vm2247, %v2236, %v2033
        %v2255 = vsel %vm2247, %v2238, %v2035
        %v2257 = vsel %vm2247, %v2240, %v2037
        %v2259 = vsel %vm2247, %v2242, %v2039
        %v2261 = vsel %vm2247, %v2244, %v2041
        %v2263 = vsel %vm2247, %v2246, %v2043
        %vm2264 = vcmask 195584
        %v2266 = vsel %vm2264, %v2249, %v2077
        %v2268 = vsel %vm2264, %v2251, %v2079
        %v2270 = vsel %vm2264, %v2253, %v2081
        %v2272 = vsel %vm2264, %v2255, %v2083
        %v2274 = vsel %vm2264, %v2257, %v2085
        %v2276 = vsel %vm2264, %v2259, %v2087
        %v2278 = vsel %vm2264, %v2261, %v2089
        %v2280 = vsel %vm2264, %v2263, %v2091
        %vm2281 = vcmask 228352
        %v2283 = vsel %vm2281, %v2266, %v2117
        %v2285 = vsel %vm2281, %v2268, %v2119
        %v2287 = vsel %vm2281, %v2270, %v2121
        %v2289 = vsel %vm2281, %v2272, %v2123
        %v2291 = vsel %vm2281, %v2274, %v2125
        %v2293 = vsel %vm2281, %v2276, %v2127
        %v2295 = vsel %vm2281, %v2278, %v2129
        %v2297 = vsel %vm2281, %v2280, %v2131
        %vm2298 = vcmask 261120
        %v2300 = vsel %vm2298, %v2283, %v2157
        %v2302 = vsel %vm2298, %v2285, %v2159
        %v2304 = vsel %vm2298, %v2287, %v2161
        %v2306 = vsel %vm2298, %v2289, %v2163
        %v2308 = vsel %vm2298, %v2291, %v2165
        %v2310 = vsel %vm2298, %v2293, %v2167
        %v2312 = vsel %vm2298, %v2295, %v2169
        %v2314 = vsel %vm2298, %v2297, %v2171
        %v2315 = vld [vmem:[%s2] sm:$0xf]
        %v2316 = vld [vmem:[%s2 + $0x4] sm:$0xf]
        %v2317 = vld [vmem:[%s2 + $0x8] sm:$0xf]
        %v2318 = vld [vmem:[%s2 + $0xc] sm:$0xf]
        %v2319 = vld [vmem:[%s2 + $0x10] sm:$0x3]
        %v2320 = vld [vmem:[%s5] sm:$0x1]
        %v2322 = vlaneseq
        %v2323 = vshrl.u32 %v2322, 7
        %v2324 = vsub.s32 0, %v2323
        %v2325 = vrot.slane %v2320, %v2324
        %v2332 = vunpack.c.l.b16 %v2315
        %v2333 = vunpack.c.l.b16 %v2316
        %v2334 = vunpack.c.l.b16 %v2317
        %v2335 = vunpack.c.l.b16 %v2318
        %v2336 = vunpack.c.l.b16 %v2319
        %v2337 = vpack.c.b16 %v2333, %v2332
        %v2338 = vpack.c.b16 %v2335, %v2334
        %v2339 = vpack.c.b16 %v2336, %v2336
        %vm2342 = vcmask 293888
        %v2343 = vsel %vm2342, %v2300, 0
        %v2345 = vsel %vm2342, %v2302, 0
        %v2347 = vsel %vm2342, %v2304, 0
        %v2349 = vsel %vm2342, %v2306, 0
        %v2351 = vsel %vm2342, %v2308, 0
        %v2353 = vsel %vm2342, %v2310, 0
        %v2355 = vsel %vm2342, %v2312, 0
        %v2357 = vsel %vm2342, %v2314, 0
        %vm2359 = vcmask 1041408
        %v2361 = vsel %vm2359, %v2339, 0
        %2363 = vmatprep.subr.bf16.mxu0 0
        %2364 = vmatpush1.bf16.msra.mxu0 0
        %2365 = vmatprep.subr.bf16.mxu0 0
        %2366 = vmatpush1.bf16.msra.mxu0 0
        %2367 = vmatprep.subr.bf16.mxu0 0
        %2368 = vmatpush1.bf16.msra.mxu0 0
        %2369 = vmatprep.subr.bf16.mxu0 0
        %2370 = vmatpush1.bf16.msra.mxu0 0
        %2371 = vmatprep.subr.bf16.mxu0 0
        %2372 = vmatpush1.bf16.msra.mxu0 0
        %2373 = vmatprep.subr.bf16.mxu0 0
        %2374 = vmatpush1.bf16.msra.mxu0 %v2361
        %2375 = vmatprep.subr.bf16.mxu0 0
        %2376 = vmatpush1.bf16.msra.mxu0 %v2338
        %2377 = vmatprep.subr.bf16.mxu0 0
        %2378 = vmatpush1.bf16.msra.mxu0 %v2337
        %2379 = vmatprep.subr.bf16.mxu0 0
        %2380 = vmatpush2.bf16.msra.mxu0 0
        %2381 = vmatprep.subr.bf16.mxu0 0
        %2382 = vmatpush2.bf16.msra.mxu0 0
        %2383 = vmatprep.subr.bf16.mxu0 0
        %2384 = vmatpush2.bf16.msra.mxu0 0
        %2385 = vmatprep.subr.bf16.mxu0 0
        %2386 = vmatpush2.bf16.msra.mxu0 0
        %2387 = vmatprep.subr.bf16.mxu0 0
        %2388 = vmatpush2.bf16.msra.mxu0 0
        %2389 = vmatprep.subr.bf16.mxu0 0
        %2390 = vmatpush2.bf16.msra.mxu0 0
        %2391 = vmatprep.subr.bf16.mxu0 0
        %2392 = vmatpush2.bf16.msra.mxu0 0
        %2393 = vmatprep.subr.bf16.mxu0 0
        %2394 = vmatpush2.bf16.msra.mxu0 0
        %2395 = vmatprep.mubr.bf16.mxu0 0
        %2396 = vmatmul.mubr.bf16.gmra.mxu0 %v2343
        %v2397 = vpop.f32.mrf.mxu0
        %v2398 = vadd.f32 %v2325, %v2397
        %v2399 = vpop.f32.mrf.mxu0
        %v2400 = vpop.f32.mrf.mxu0
        %v2401 = vadd.f32 %v2325, %v2400
        %v2402 = vpop.f32.mrf.mxu0
        %2403 = vmatprep.mubr.bf16.mxu0 0
        %2404 = vmatmul.mubr.bf16.gmra.mxu0 %v2345
        %v2405 = vpop.f32.mrf.mxu0
        %v2406 = vadd.f32 %v2325, %v2405
        %v2407 = vpop.f32.mrf.mxu0
        %v2408 = vpop.f32.mrf.mxu0
        %v2409 = vadd.f32 %v2325, %v2408
        %v2410 = vpop.f32.mrf.mxu0
        %2411 = vmatprep.mubr.bf16.mxu0 0
        %2412 = vmatmul.mubr.bf16.gmra.mxu0 %v2347
        %v2413 = vpop.f32.mrf.mxu0
        %v2414 = vadd.f32 %v2325, %v2413
        %v2415 = vpop.f32.mrf.mxu0
        %v2416 = vpop.f32.mrf.mxu0
        %v2417 = vadd.f32 %v2325, %v2416
        %v2418 = vpop.f32.mrf.mxu0
        %2419 = vmatprep.mubr.bf16.mxu0 0
        %2420 = vmatmul.mubr.bf16.gmra.mxu0 %v2349
        %v2421 = vpop.f32.mrf.mxu0
        %v2422 = vadd.f32 %v2325, %v2421
        %v2423 = vpop.f32.mrf.mxu0
        %v2424 = vpop.f32.mrf.mxu0
        %v2425 = vadd.f32 %v2325, %v2424
        %v2426 = vpop.f32.mrf.mxu0
        %2427 = vmatprep.mubr.bf16.mxu0 0
        %2428 = vmatmul.mubr.bf16.gmra.mxu0 %v2351
        %v2429 = vpop.f32.mrf.mxu0
        %v2430 = vadd.f32 %v2325, %v2429
        %v2431 = vpop.f32.mrf.mxu0
        %v2432 = vpop.f32.mrf.mxu0
        %v2433 = vadd.f32 %v2325, %v2432
        %v2434 = vpop.f32.mrf.mxu0
        %2435 = vmatprep.mubr.bf16.mxu0 0
        %2436 = vmatmul.mubr.bf16.gmra.mxu0 %v2353
        %v2437 = vpop.f32.mrf.mxu0
        %v2438 = vadd.f32 %v2325, %v2437
        %v2439 = vpop.f32.mrf.mxu0
        %v2440 = vpop.f32.mrf.mxu0
        %v2441 = vadd.f32 %v2325, %v2440
        %v2442 = vpop.f32.mrf.mxu0
        %2443 = vmatprep.mubr.bf16.mxu0 0
        %2444 = vmatmul.mubr.bf16.gmra.mxu0 %v2355
        %v2445 = vpop.f32.mrf.mxu0
        %v2446 = vadd.f32 %v2325, %v2445
        %v2447 = vpop.f32.mrf.mxu0
        %v2448 = vpop.f32.mrf.mxu0
        %v2449 = vadd.f32 %v2325, %v2448
        %v2450 = vpop.f32.mrf.mxu0
        %2451 = vmatprep.mubr.bf16.mxu0 0
        %2452 = vmatmul.mubr.bf16.gmra.mxu0 %v2357
        %v2453 = vpop.f32.mrf.mxu0
        %v2454 = vadd.f32 %v2325, %v2453
        %v2455 = vpop.f32.mrf.mxu0
        %v2456 = vpop.f32.mrf.mxu0
        %v2457 = vadd.f32 %v2325, %v2456
        %v2458 = vpop.f32.mrf.mxu0
        %2459 = vdwg.mxu0
        %v2460 = vmax.f32 %v2398, 0.0
        %v2461 = vmax.f32 %v2401, 0.0
        %v2462 = vmax.f32 %v2406, 0.0
        %v2463 = vmax.f32 %v2409, 0.0
        %v2464 = vmax.f32 %v2414, 0.0
        %v2465 = vmax.f32 %v2417, 0.0
        %v2466 = vmax.f32 %v2422, 0.0
        %v2467 = vmax.f32 %v2425, 0.0
        %v2468 = vmax.f32 %v2430, 0.0
        %v2469 = vmax.f32 %v2433, 0.0
        %v2470 = vmax.f32 %v2438, 0.0
        %v2471 = vmax.f32 %v2441, 0.0
        %v2472 = vmax.f32 %v2446, 0.0
        %v2473 = vmax.f32 %v2449, 0.0
        %v2474 = vmax.f32 %v2454, 0.0
        %v2475 = vmax.f32 %v2457, 0.0
        %v2476 = vpack.c.bf16 %v2461, %v2460
        %v2477 = vpack.c.bf16 %v2463, %v2462
        %v2478 = vpack.c.bf16 %v2465, %v2464
        %v2479 = vpack.c.bf16 %v2467, %v2466
        %v2480 = vpack.c.bf16 %v2469, %v2468
        %v2481 = vpack.c.bf16 %v2471, %v2470
        %v2482 = vpack.c.bf16 %v2473, %v2472
        %v2483 = vpack.c.bf16 %v2475, %v2474
        %v2484 = vld [vmem:[%s3] sm:$0x3]
        %v2485 = vld [vmem:[%s6] sm:$0x1]
        %v2487 = vlaneseq
        %v2488 = vshrl.u32 %v2487, 7
        %v2489 = vsub.s32 0, %v2488
        %v2490 = vrot.slane %v2485, %v2489
        %v2493 = vsel %vm2172, %v2476, 0
        %v2496 = vsel %vm2172, %v2477, 0
        %v2499 = vsel %vm2172, %v2478, 0
        %v2502 = vsel %vm2172, %v2479, 0
        %v2505 = vsel %vm2172, %v2480, 0
        %v2508 = vsel %vm2172, %v2481, 0
        %v2511 = vsel %vm2172, %v2482, 0
        %v2514 = vsel %vm2172, %v2483, 0
        %v2517 = vsel %vm2359, %v2484, 0
        %2519 = vmatprep.subr.bf16.mxu0 0
        %2520 = vmatpush1.bf16.msra.mxu0 0
        %2521 = vmatprep.subr.bf16.mxu0 0
        %2522 = vmatpush1.bf16.msra.mxu0 0
        %2523 = vmatprep.subr.bf16.mxu0 0
        %2524 = vmatpush1.bf16.msra.mxu0 0
        %2525 = vmatprep.subr.bf16.mxu0 0
        %2526 = vmatpush1.bf16.msra.mxu0 0
        %2527 = vmatprep.subr.bf16.mxu0 0
        %2528 = vmatpush1.bf16.msra.mxu0 0
        %2529 = vmatprep.subr.bf16.mxu0 0
        %2530 = vmatpush1.bf16.msra.mxu0 0
        %2531 = vmatprep.subr.bf16.mxu0 0
        %2532 = vmatpush1.bf16.msra.mxu0 0
        %2533 = vmatprep.subr.bf16.mxu0 0
        %2534 = vmatpush1.bf16.msra.mxu0 %v2517
        %2535 = vmatprep.subr.bf16.mxu0 0
        %2536 = vmatpush2.bf16.msra.mxu0 0
        %2537 = vmatprep.subr.bf16.mxu0 0
        %2538 = vmatpush2.bf16.msra.mxu0 0
        %2539 = vmatprep.subr.bf16.mxu0 0
        %2540 = vmatpush2.bf16.msra.mxu0 0
        %2541 = vmatprep.subr.bf16.mxu0 0
        %2542 = vmatpush2.bf16.msra.mxu0 0
        %2543 = vmatprep.subr.bf16.mxu0 0
        %2544 = vmatpush2.bf16.msra.mxu0 0
        %2545 = vmatprep.subr.bf16.mxu0 0
        %2546 = vmatpush2.bf16.msra.mxu0 0
        %2547 = vmatprep.subr.bf16.mxu0 0
        %2548 = vmatpush2.bf16.msra.mxu0 0
        %2549 = vmatprep.subr.bf16.mxu0 0
        %2550 = vmatpush2.bf16.msra.mxu0 0
        %2551 = vmatprep.mubr.bf16.mxu0 0
        %2552 = vmatmul.mubr.bf16.gmra.mxu0 %v2493
        %v2553 = vpop.f32.mrf.mxu0
        %v2554 = vadd.f32 %v2490, %v2553
        %v2555 = vpop.f32.mrf.mxu0
        %v2556 = vpop.f32.mrf.mxu0
        %v2557 = vadd.f32 %v2490, %v2556
        %v2558 = vpop.f32.mrf.mxu0
        %2559 = vmatprep.mubr.bf16.mxu0 0
        %2560 = vmatmul.mubr.bf16.gmra.mxu0 %v2496
        %v2561 = vpop.f32.mrf.mxu0
        %v2562 = vadd.f32 %v2490, %v2561
        %v2563 = vpop.f32.mrf.mxu0
        %v2564 = vpop.f32.mrf.mxu0
        %v2565 = vadd.f32 %v2490, %v2564
        %v2566 = vpop.f32.mrf.mxu0
        %2567 = vmatprep.mubr.bf16.mxu0 0
        %2568 = vmatmul.mubr.bf16.gmra.mxu0 %v2499
        %v2569 = vpop.f32.mrf.mxu0
        %v2570 = vadd.f32 %v2490, %v2569
        %v2571 = vpop.f32.mrf.mxu0
        %v2572 = vpop.f32.mrf.mxu0
        %v2573 = vadd.f32 %v2490, %v2572
        %v2574 = vpop.f32.mrf.mxu0
        %2575 = vmatprep.mubr.bf16.mxu0 0
        %2576 = vmatmul.mubr.bf16.gmra.mxu0 %v2502
        %v2577 = vpop.f32.mrf.mxu0
        %v2578 = vadd.f32 %v2490, %v2577
        %v2579 = vpop.f32.mrf.mxu0
        %v2580 = vpop.f32.mrf.mxu0
        %v2581 = vadd.f32 %v2490, %v2580
        %v2582 = vpop.f32.mrf.mxu0
        %2583 = vmatprep.mubr.bf16.mxu0 0
        %2584 = vmatmul.mubr.bf16.gmra.mxu0 %v2505
        %v2585 = vpop.f32.mrf.mxu0
        %v2586 = vadd.f32 %v2490, %v2585
        %v2587 = vpop.f32.mrf.mxu0
        %v2588 = vpop.f32.mrf.mxu0
        %v2589 = vadd.f32 %v2490, %v2588
        %v2590 = vpop.f32.mrf.mxu0
        %2591 = vmatprep.mubr.bf16.mxu0 0
        %2592 = vmatmul.mubr.bf16.gmra.mxu0 %v2508
        %v2593 = vpop.f32.mrf.mxu0
        %v2594 = vadd.f32 %v2490, %v2593
        %v2595 = vpop.f32.mrf.mxu0
        %v2596 = vpop.f32.mrf.mxu0
        %v2597 = vadd.f32 %v2490, %v2596
        %v2598 = vpop.f32.mrf.mxu0
        %2599 = vmatprep.mubr.bf16.mxu0 0
        %2600 = vmatmul.mubr.bf16.gmra.mxu0 %v2511
        %v2601 = vpop.f32.mrf.mxu0
        %v2602 = vadd.f32 %v2490, %v2601
        %v2603 = vpop.f32.mrf.mxu0
        %v2604 = vpop.f32.mrf.mxu0
        %v2605 = vadd.f32 %v2490, %v2604
        %v2606 = vpop.f32.mrf.mxu0
        %2607 = vmatprep.mubr.bf16.mxu0 0
        %2608 = vmatmul.mubr.bf16.gmra.mxu0 %v2514
        %v2609 = vpop.f32.mrf.mxu0
        %v2610 = vadd.f32 %v2490, %v2609
        %v2611 = vpop.f32.mrf.mxu0
        %v2612 = vpop.f32.mrf.mxu0
        %v2613 = vadd.f32 %v2490, %v2612
        %v2614 = vpop.f32.mrf.mxu0
        %2615 = vdwg.mxu0
        %v2616 = vadd.f32 %v2554, %v316
        %v2617 = vadd.f32 %v2557, %v317
        %v2618 = vadd.f32 %v2562, %v318
        %v2619 = vadd.f32 %v2565, %v319
        %v2620 = vadd.f32 %v2570, %v320
        %v2621 = vadd.f32 %v2573, %v321
        %v2622 = vadd.f32 %v2578, %v322
        %v2623 = vadd.f32 %v2581, %v323
        %v2624 = vadd.f32 %v2586, %v324
        %v2625 = vadd.f32 %v2589, %v325
        %v2626 = vadd.f32 %v2594, %v326
        %v2627 = vadd.f32 %v2597, %v327
        %v2628 = vadd.f32 %v2602, %v328
        %v2629 = vadd.f32 %v2605, %v329
        %v2630 = vadd.f32 %v2610, %v330
        %v2631 = vadd.f32 %v2613, %v331
        %v2632 = vmax.f32 %v2616, 0.0
        %v2633 = vmax.f32 %v2617, 0.0
        %v2634 = vmax.f32 %v2618, 0.0
        %v2635 = vmax.f32 %v2619, 0.0
        %v2636 = vmax.f32 %v2620, 0.0
        %v2637 = vmax.f32 %v2621, 0.0
        %v2638 = vmax.f32 %v2622, 0.0
        %v2639 = vmax.f32 %v2623, 0.0
        %v2640 = vmax.f32 %v2624, 0.0
        %v2641 = vmax.f32 %v2625, 0.0
        %v2642 = vmax.f32 %v2626, 0.0
        %v2643 = vmax.f32 %v2627, 0.0
        %v2644 = vmax.f32 %v2628, 0.0
        %v2645 = vmax.f32 %v2629, 0.0
        %v2646 = vmax.f32 %v2630, 0.0
        %v2647 = vmax.f32 %v2631, 0.0
        %2648 = vst.msk [vmem:[%s310] sm:$0xff] %vm355, %v2632
        %2649 = vst.msk [vmem:[%s310 + $0x8] sm:$0xff] %vm355, %v2633
        %2650 = vst.msk [vmem:[%s310 + $0x10] sm:$0xff] %vm355, %v2634
        %2651 = vst.msk [vmem:[%s310 + $0x18] sm:$0xff] %vm355, %v2635
        %2652 = vst.msk [vmem:[%s310 + $0x20] sm:$0xff] %vm355, %v2636
        %2653 = vst.msk [vmem:[%s310 + $0x28] sm:$0xff] %vm355, %v2637
        %2654 = vst.msk [vmem:[%s310 + $0x30] sm:$0xff] %vm355, %v2638
        %2655 = vst.msk [vmem:[%s310 + $0x38] sm:$0xff] %vm355, %v2639
        %2656 = vst.msk [vmem:[%s310 + $0x40] sm:$0xff] %vm355, %v2640
        %2657 = vst.msk [vmem:[%s310 + $0x48] sm:$0xff] %vm355, %v2641
        %2658 = vst.msk [vmem:[%s310 + $0x50] sm:$0xff] %vm355, %v2642
        %2659 = vst.msk [vmem:[%s310 + $0x58] sm:$0xff] %vm355, %v2643
        %2660 = vst.msk [vmem:[%s310 + $0x60] sm:$0xff] %vm355, %v2644
        %2661 = vst.msk [vmem:[%s310 + $0x68] sm:$0xff] %vm355, %v2645
        %2662 = vst.msk [vmem:[%s310 + $0x70] sm:$0xff] %vm355, %v2646
        %2663 = vst.msk [vmem:[%s310 + $0x78] sm:$0xff] %vm355, %v2647
        %s2664 = sand.u32 %s198, 1
        %s2665 = scalar_lea.sflag [#allocation5], %s2664
        %s2666 = sand.u32 %s198, 1
        %s2667 = smul.addr %s2666, 128
        %s2668 = scalar_lea.vmem [#allocation6], %s2667
        // Predicated region
        $region53: #{tpu_custom_call.1} parent=47 // pred_check
          %p2669 = pneg %p208
        $region54: #{tpu_custom_call.1} parent=47 // pred_check_branch
          %2671 = sbr.rel (%p2669) target = $region56
        $region55: #{tpu_custom_call.1} parent=47 // pred_region
          %s2672 = smul.u32 8, %s29
          %s2674 = ssub.s32 2048, 2048
          %2675 = vsyncadd %s2665, %s2674
          %s2676 = smul.addr %s2672, 2
          %s2677 = smul.addr %s28, 32
          %s2678 = sadd.s32 %s2676, %s2677
          %s2679 = smul.addr %s2678, 128
          %s2680 = scalar_lea.hbm %s7, %s2679
          %s2681 = sshll.u32 %s2668, 4
          %s2682 = int_to_ptr.vmem [resolvable:$true] %s2681
          %2687 = dma.vmem_to_hbm [thread:$0]  %s2682, 2048, %s2680, %s2665, 128, 128, 8
        $region56: #{tpu_custom_call.1} parent=47 // pred_fallthru
          _
      $region48: #{tpu_custom_call.1} parent=5 // pred_fallthru
        _
      %p2688 = scmp.le.s32.totalorder 2, %s19
      // Predicated region
      $region57: #{tpu_custom_call.1} parent=5 // pred_check
        %p2689 = pneg %p2688
      $region58: #{tpu_custom_call.1} parent=5 // pred_check_branch
        %2691 = sbr.rel (%p2689) target = $region60
      $region59: #{tpu_custom_call.1} parent=5 // pred_region
        %s2692 = ssub.s32 %s19, 2
        // Predicated region
        $region61: #{tpu_custom_call.1} parent=59 // pred_check
          %p2693 = pneg %p214
        $region62: #{tpu_custom_call.1} parent=59 // pred_check_branch
          %2695 = sbr.rel (%p2693) target = $region64
        $region63: #{tpu_custom_call.1} parent=59 // pred_region
          %s2696 = sand.u32 %s199, 1
          %s2697 = scalar_lea.sflag [#allocation5], %s2696
          %s2698 = sand.u32 %s199, 1
          %s2699 = smul.addr %s2698, 128
          %s2700 = scalar_lea.vmem [#allocation6], %s2699
          %2701 = dma.done %s2697, 2048
        $region64: #{tpu_custom_call.1} parent=59 // pred_fallthru
          _
      $region60: #{tpu_custom_call.1} parent=5 // pred_fallthru
        _
    $region6: #{tpu_custom_call.1} parent=1 // loop_footer
      %s23 = sadd.s32 1, %s19
    $region7: #{tpu_custom_call.1} parent=1 // loop_footer_branch
      %18 = sbr.rel target = $region3
    $region8: #{tpu_custom_call.1} parent=1 // loop_exit
      _
    %2702 = vsyncpa [#allocation4], 1
    %s2703 = scalar_lea.sflag [#allocation4], 1
    %2704 = vsyncpa %s2703, 1
    %2705 = vsyncpa [#allocation5], 1
    %s2706 = scalar_lea.sflag [#allocation5], 1
    %2707 = vsyncpa %s2706, 1

</llo_original>
